<compile_context>
chip_gen: v6e
topology: v6e:2x2x1
jax: 0.10.0
libtpu: 0.0.40
codegen_flags: <defaults>
</compile_context>

<pallas_src>
import numpy as np
import jax
import jax.numpy as jnp
from jax.experimental import pallas as pl
from jax.experimental.pallas import tpu as pltpu

CIN = 3
COUT = 16                 # body output channels
KH = KW = 3
POOL_OUT = 4              # adaptive average pool output spatial size
DESCRIPTOR = COUT * POOL_OUT * POOL_OUT   # 256 == descriptor_size (non-shufflenet)
HIDDEN = 32               # hidden_layer_size
TB = 8                    # images per grid step -> conv matmul M = TB*H = 128


# ---------------------------------------------------------------------------
# Fused kernel: conv3x3+ReLU -> adaptive avg-pool 4x4 -> flatten -> clf -> sigmoid
# One grid step == TB images stacked along the matmul M dimension.
# ---------------------------------------------------------------------------
def _fused_kernel(x_ref, wcomb_ref, bconv_ref, pool_ref, c_ref, b1_ref,
                  fc2_ref, b2_ref, o_ref):
    tb = pool_ref.shape[0] // POOL_OUT

    # ---- conv 3x3 (stride 1, pad 1) + bias + ReLU -------------------------
    # x_ref[0, kh] is the pre-shifted, TB-stacked padded-row slab (TB*H, (W+2)*CIN);
    # wcomb[kh] is the shifted-block-diagonal weight ((W+2)*CIN, W*COUT). The im2col
    # is never materialized; 3 aligned bf16 matmuls with f32 accumulation.
    acc = jnp.dot(x_ref[0, 0], wcomb_ref[0], preferred_element_type=jnp.float32)
    for kh in range(1, KH):
        acc = acc + jnp.dot(x_ref[0, kh], wcomb_ref[kh],
                            preferred_element_type=jnp.float32)
    feat = jnp.maximum(acc + bconv_ref[...], 0.0)              # (TB*H, W*COUT) f32

    # ---- adaptive avg-pool over rows for all TB images at once ------------
    # pool_ref rows are ordered ph*TB + t so the slices below are 8-sublane aligned.
    pooled = jnp.dot(pool_ref[...], feat,
                     preferred_element_type=jnp.float32)       # (4*TB, W*COUT)

    # ---- ir_clf: fc1 (width pooling folded into c_ref) -> ReLU ------------
    h = b1_ref[...]                                            # (1, HIDDEN)
    for ph in range(POOL_OUT):
        h = h + jnp.dot(pooled[ph * tb:(ph + 1) * tb, :], c_ref[ph],
                        preferred_element_type=jnp.float32)    # (TB, HIDDEN)
    h = jnp.maximum(h, 0.0)

    # ---- fc2 + sigmoid (VPU/XLU) ------------------------------------------
    z = jnp.sum(h * fc2_ref[...], axis=1, keepdims=True) + b2_ref[...]   # (TB, 1)
    y = jax.nn.sigmoid(z)

    # ---- pack TB scalar results into one lane-dense 128-lane row ----------
    sub = jax.lax.broadcasted_iota(jnp.int32, (tb, 128), 0)
    lane = jax.lax.broadcasted_iota(jnp.int32, (tb, 128), 1)
    row = jnp.sum(jnp.where(sub == lane, y, 0.0), axis=0, keepdims=True)  # (1, 128)
    o_ref[0] = row


# ---------------------------------------------------------------------------
# Wrapper
# ---------------------------------------------------------------------------
def idrnd_liveness_v1_forward(x_nchw, params, tb=TB):
    """Forward pass; returns [x_ir] to mirror the PyTorch module."""
    B, C, H, W = x_nchw.shape
    assert C == CIN
    if H % POOL_OUT or W % POOL_OUT:
        # TODO(synk): PyTorch AdaptiveAvgPool2d uses uneven bins when H, W are not
        #             multiples of 4; only the evenly-divisible case is implemented.
        raise NotImplementedError("H and W must be multiples of POOL_OUT=4")
    fh, fw = H // POOL_OUT, W // POOL_OUT
    Hp, Wp = H + 2, W + 2
    WpC = Wp * CIN
    WCOUT = W * COUT

    # The shifted-block-diagonal conv weights are O(W^2 * COUT); guard VMEM (v7x: 64 MiB).
    if KH * WpC * WCOUT * 2 > 8 * 1024 * 1024:
        # TODO(synk): tile W (extra grid axis) / switch to a tiled im2col conv for large images.
        raise NotImplementedError("image width too large for resident conv weights; tile W")

    nb = -(-B // tb)          # grid steps
    Bp = nb * tb              # padded batch

    # ---- input: NCHW -> NHWC -> pad -> kh-shifted, TB-stacked row slabs (bf16) ----
    x_nhwc = jnp.transpose(x_nchw, (0, 2, 3, 1)).astype(jnp.float32)
    if Bp > B:
        x_nhwc = jnp.concatenate(
            [x_nhwc, jnp.zeros((Bp - B, H, W, CIN), jnp.float32)], axis=0)
    xpad = jnp.pad(x_nhwc, ((0, 0), (1, 1), (1, 1), (0, 0))).reshape(Bp, Hp, WpC)
    shifted = jnp.stack([xpad[:, kh:kh + H, :] for kh in range(KH)], axis=1)  # (Bp,KH,H,WpC)
    xrows = (shifted.reshape(nb, tb, KH, H, WpC)
             .transpose(0, 2, 1, 3, 4)
             .reshape(nb, KH, tb * H, WpC)
             .astype(jnp.bfloat16))
    # TODO(synk): the padded/shifted slab is still materialized in HBM by XLA (~1.7x the raw
    #             input bytes); building the halo in a VMEM scratch would avoid that re-read.

    # ---- conv weight -> KH "shifted block diagonal" matrices (Wp*CIN, W*COUT), bf16 ----
    # wcomb[kh][(w+kw)*CIN + c, w*COUT + co] = conv_w[kh, kw, c, co]
    w4 = params["conv_w"].reshape(KH, KW, CIN, COUT)
    r_idx = (CIN * (np.arange(KW)[:, None, None] + np.arange(W)[None, :, None])
             + np.arange(CIN)[None, None, :])                         # (KW, W, CIN)
    sel = jnp.asarray(np.arange(WpC)[None, None, None, :] == r_idx[..., None],
                      jnp.float32)                                    # (KW, W, CIN, WpC)
    wcomb = (jnp.einsum("kwcr,hkco->hrwo", sel, w4)
             .reshape(KH, WpC, WCOUT).astype(jnp.bfloat16))
    bconv = jnp.tile(params["conv_b"], W).reshape(1, WCOUT).astype(jnp.float32)

    # ---- row-pool matrix for TB stacked images (rows ordered ph*TB + t) ----
    A = np.zeros((POOL_OUT * tb, tb * H), np.float32)
    for t in range(tb):
        for h in range(H):
            A[(h // fh) * tb + t, t * H + h] = 1.0 / fh
    pool_mat = jnp.asarray(A)

    # ---- fc1 with the width pooling folded in ------------------------------
    # c[ph, w*COUT + co, k] = fc1_w[co*16 + ph*4 + (w // fw), k] / fw   (torch NCHW flatten order)
    fc1 = params["fc1_w"].reshape(COUT, POOL_OUT, POOL_OUT, HIDDEN)
    c_fold = (jnp.transpose(fc1[:, :, np.arange(W) // fw, :], (1, 2, 0, 3))
              .reshape(POOL_OUT, WCOUT, HIDDEN) / fw).astype(jnp.float32)
    b1 = params["fc1_b"].reshape(1, HIDDEN).astype(jnp.float32)
    fc2_row = params["fc2_w"].reshape(1, HIDDEN).astype(jnp.float32)
    b2 = params["fc2_b"].reshape(1, 1).astype(jnp.float32)

    out = pl.pallas_call(
        _fused_kernel,
        out_shape=jax.ShapeDtypeStruct((nb, 1, 128), jnp.float32),
        grid=(nb,),
        in_specs=[
            pl.BlockSpec((1, KH, tb * H, WpC), lambda b: (b, 0, 0, 0)),     # shifted image slabs
            pl.BlockSpec((KH, WpC, WCOUT), lambda b: (0, 0, 0)),            # conv weights
            pl.BlockSpec((1, WCOUT), lambda b: (0, 0)),                     # conv bias
            pl.BlockSpec((POOL_OUT * tb, tb * H), lambda b: (0, 0)),        # row-pool matrix
            pl.BlockSpec((POOL_OUT, WCOUT, HIDDEN), lambda b: (0, 0, 0)),   # fc1 (pool folded)
            pl.BlockSpec((1, HIDDEN), lambda b: (0, 0)),                    # fc1 bias
            pl.BlockSpec((1, HIDDEN), lambda b: (0, 0)),                    # fc2 (row vec)
            pl.BlockSpec((1, 1), lambda b: (0, 0)),                         # fc2 bias
        ],
        out_specs=pl.BlockSpec((1, 1, 128), lambda b: (b, 0, 0)),
        compiler_params=pltpu.CompilerParams(
            dimension_semantics=("parallel",),   # batch-block axis -> both TCs on v7x for nb >= 2
            vmem_limit_bytes=16 * 1024 * 1024,   # resident data ~0.3 MiB at W=16
        ),
    )(xrows, wcomb, bconv, pool_mat, c_fold, b1, fc2_row, b2)

    x_ir = out[:, 0, :tb].reshape(Bp)[:B].reshape(B, 1)
    return [x_ir]


# ---------------------------------------------------------------------------
# Pure-JAX reference (same math; conv operands bf16-cast like the kernel)
# ---------------------------------------------------------------------------
def reference_forward(x_nchw, params):
    x_nhwc = jnp.transpose(x_nchw, (0, 2, 3, 1)).astype(jnp.float32)
    B, H, W, C = x_nhwc.shape
    xp = jnp.pad(x_nhwc, ((0, 0), (1, 1), (1, 1), (0, 0)))
    cols = [xp[:, kh:kh + H, kw:kw + W, :] for kh in range(KH) for kw in range(KW)]
    patches = jnp.concatenate(cols, axis=-1).reshape(B * H * W, KH * KW * C)
    feat = jnp.maximum(
        jnp.dot(patches.astype(jnp.bfloat16), params["conv_w"].astype(jnp.bfloat16),
                preferred_element_type=jnp.float32) + params["conv_b"], 0.0)
    feat = feat.reshape(B, H, W, COUT)
    pooled = feat.reshape(B, POOL_OUT, H // POOL_OUT, POOL_OUT, W // POOL_OUT, COUT).mean(axis=(2, 4))
    desc = jnp.transpose(pooled, (0, 3, 1, 2)).reshape(B, DESCRIPTOR)
    h = jnp.maximum(desc @ params["fc1_w"] + params["fc1_b"], 0.0)
    return [jax.nn.sigmoid(h @ params["fc2_w"] + params["fc2_b"])]


# ---------------------------------------------------------------------------
if __name__ == "__main__":
    key = jax.random.PRNGKey(0)
    ks = jax.random.split(key, 7)
    params = {
        "conv_w": jax.random.normal(ks[0], (KH * KW * CIN, COUT), jnp.float32) * 0.1,
        "conv_b": jax.random.normal(ks[1], (COUT,), jnp.float32) * 0.1,
        "fc1_w":  jax.random.normal(ks[2], (DESCRIPTOR, HIDDEN), jnp.float32) * 0.05,
        "fc1_b":  jax.random.normal(ks[3], (HIDDEN,), jnp.float32) * 0.05,
        "fc2_w":  jax.random.normal(ks[4], (HIDDEN, 1), jnp.float32) * 0.05,
        "fc2_b":  jax.random.normal(ks[5], (1,), jnp.float32) * 0.05,
    }
    x = jax.random.normal(ks[6], (2, CIN, 16, 16), jnp.float32)   # NCHW, like PyTorch

    fwd = jax.jit(idrnd_liveness_v1_forward)
    out = fwd(x, params)
    out = [jax.block_until_ready(o) for o in out]

    ref = reference_forward(x, params)
    assert out[0].shape == (2, 1)
    # bf16 conv operands / reduced-precision f32 matmul paths -> slightly loosened tolerance
    assert jnp.allclose(out[0], ref[0], atol=2e-3, rtol=2e-3), (out[0], ref[0])

    print("KERNEL_OK")
</pallas_src>

<mosaic_0001>
module attributes {stable_mosaic.version = 11 : i64} {
  func.func @_fused_kernel(%arg0: i32, %arg1: memref<1x3x128x54xbf16, #tpu.memory_space<vmem>>, %arg2: memref<3x54x256xbf16, #tpu.memory_space<vmem>>, %arg3: memref<1x256xf32, #tpu.memory_space<vmem>>, %arg4: memref<32x128xf32, #tpu.memory_space<vmem>>, %arg5: memref<4x256x32xf32, #tpu.memory_space<vmem>>, %arg6: memref<1x32xf32, #tpu.memory_space<vmem>>, %arg7: memref<1x32xf32, #tpu.memory_space<vmem>>, %arg8: memref<1x1xf32, #tpu.memory_space<vmem>>, %arg9: memref<1x1x128xf32, #tpu.memory_space<vmem>>) attributes {dimension_semantics = [#tpu.dimension_semantics<parallel>], iteration_bounds = array<i64: 1>, scalar_prefetch = 0 : i64, scratch_operands = 0 : i64, tpu.core_type = #tpu.core_type<tc>, window_params = [{transform_indices = @transform_0, window_bounds = array<i64: 1, 3, 128, 54>}, {pipeline_mode = #tpu.pipeline_mode<synchronous>, transform_indices = @transform_1, window_bounds = array<i64: 3, 54, 256>}, {pipeline_mode = #tpu.pipeline_mode<synchronous>, transform_indices = @transform_2, window_bounds = array<i64: 1, 256>}, {pipeline_mode = #tpu.pipeline_mode<synchronous>, transform_indices = @transform_3, window_bounds = array<i64: 32, 128>}, {pipeline_mode = #tpu.pipeline_mode<synchronous>, transform_indices = @transform_4, window_bounds = array<i64: 4, 256, 32>}, {pipeline_mode = #tpu.pipeline_mode<synchronous>, transform_indices = @transform_5, window_bounds = array<i64: 1, 32>}, {pipeline_mode = #tpu.pipeline_mode<synchronous>, transform_indices = @transform_6, window_bounds = array<i64: 1, 32>}, {pipeline_mode = #tpu.pipeline_mode<synchronous>, transform_indices = @transform_7, window_bounds = array<i64: 1, 1>}, {transform_indices = @transform_8, window_bounds = array<i64: 1, 1, 128>}]} {
    %c0 = arith.constant 0 : index
    %c0_0 = arith.constant 0 : index
    %c0_1 = arith.constant 0 : index
    %c0_2 = arith.constant 0 : index
    %0 = vector.load %arg1[%c0, %c0_0, %c0_1, %c0_2] : memref<1x3x128x54xbf16, #tpu.memory_space<vmem>>, vector<1x1x128x54xbf16>
    %1 = vector.shape_cast %0 : vector<1x1x128x54xbf16> to vector<128x54xbf16>
    %c0_3 = arith.constant 0 : index
    %c0_4 = arith.constant 0 : index
    %c0_5 = arith.constant 0 : index
    %2 = vector.load %arg2[%c0_3, %c0_4, %c0_5] : memref<3x54x256xbf16, #tpu.memory_space<vmem>>, vector<1x54x256xbf16>
    %3 = vector.shape_cast %2 : vector<1x54x256xbf16> to vector<54x256xbf16>
    %cst = arith.constant dense<0.000000e+00> : vector<128x256xf32>
    %4 = tpu.matmul %1, %3, %cst {dimension_numbers = #tpu.dot_dimension_numbers<[1], [0], [0], [1], [0, 0, 1, 1], [], []>} : vector<128x54xbf16>, vector<54x256xbf16>, vector<128x256xf32> -> vector<128x256xf32>
    %c0_6 = arith.constant 0 : index
    %c1 = arith.constant 1 : index
    %c0_7 = arith.constant 0 : index
    %c0_8 = arith.constant 0 : index
    %5 = vector.load %arg1[%c0_6, %c1, %c0_7, %c0_8] : memref<1x3x128x54xbf16, #tpu.memory_space<vmem>>, vector<1x1x128x54xbf16>
    %6 = vector.shape_cast %5 : vector<1x1x128x54xbf16> to vector<128x54xbf16>
    %c1_9 = arith.constant 1 : index
    %c0_10 = arith.constant 0 : index
    %c0_11 = arith.constant 0 : index
    %7 = vector.load %arg2[%c1_9, %c0_10, %c0_11] : memref<3x54x256xbf16, #tpu.memory_space<vmem>>, vector<1x54x256xbf16>
    %8 = vector.shape_cast %7 : vector<1x54x256xbf16> to vector<54x256xbf16>
    %cst_12 = arith.constant dense<0.000000e+00> : vector<128x256xf32>
    %9 = tpu.matmul %6, %8, %cst_12 {dimension_numbers = #tpu.dot_dimension_numbers<[1], [0], [0], [1], [0, 0, 1, 1], [], []>} : vector<128x54xbf16>, vector<54x256xbf16>, vector<128x256xf32> -> vector<128x256xf32>
    %10 = arith.addf %4, %9 : vector<128x256xf32>
    %c0_13 = arith.constant 0 : index
    %c2 = arith.constant 2 : index
    %c0_14 = arith.constant 0 : index
    %c0_15 = arith.constant 0 : index
    %11 = vector.load %arg1[%c0_13, %c2, %c0_14, %c0_15] : memref<1x3x128x54xbf16, #tpu.memory_space<vmem>>, vector<1x1x128x54xbf16>
    %12 = vector.shape_cast %11 : vector<1x1x128x54xbf16> to vector<128x54xbf16>
    %c2_16 = arith.constant 2 : index
    %c0_17 = arith.constant 0 : index
    %c0_18 = arith.constant 0 : index
    %13 = vector.load %arg2[%c2_16, %c0_17, %c0_18] : memref<3x54x256xbf16, #tpu.memory_space<vmem>>, vector<1x54x256xbf16>
    %14 = vector.shape_cast %13 : vector<1x54x256xbf16> to vector<54x256xbf16>
    %cst_19 = arith.constant dense<0.000000e+00> : vector<128x256xf32>
    %15 = tpu.matmul %12, %14, %cst_19 {dimension_numbers = #tpu.dot_dimension_numbers<[1], [0], [0], [1], [0, 0, 1, 1], [], []>} : vector<128x54xbf16>, vector<54x256xbf16>, vector<128x256xf32> -> vector<128x256xf32>
    %16 = arith.addf %10, %15 : vector<128x256xf32>
    %c0_20 = arith.constant 0 : index
    %c0_21 = arith.constant 0 : index
    %17 = vector.load %arg3[%c0_20, %c0_21] : memref<1x256xf32, #tpu.memory_space<vmem>>, vector<1x256xf32>
    %18 = vector.broadcast %17 : vector<1x256xf32> to vector<128x256xf32>
    %19 = arith.addf %16, %18 : vector<128x256xf32>
    %cst_22 = arith.constant 0.000000e+00 : f32
    %20 = vector.broadcast %cst_22 : f32 to vector<128x256xf32>
    %21 = arith.maximumf %19, %20 : vector<128x256xf32>
    %c0_23 = arith.constant 0 : index
    %c0_24 = arith.constant 0 : index
    %22 = vector.load %arg4[%c0_23, %c0_24] : memref<32x128xf32, #tpu.memory_space<vmem>>, vector<32x128xf32>
    %cst_25 = arith.constant dense<0.000000e+00> : vector<32x256xf32>
    %23 = tpu.matmul %22, %21, %cst_25 {dimension_numbers = #tpu.dot_dimension_numbers<[1], [0], [0], [1], [0, 0, 1, 1], [], []>} : vector<32x128xf32>, vector<128x256xf32>, vector<32x256xf32> -> vector<32x256xf32>
    %c0_26 = arith.constant 0 : index
    %c0_27 = arith.constant 0 : index
    %24 = vector.load %arg6[%c0_26, %c0_27] : memref<1x32xf32, #tpu.memory_space<vmem>>, vector<1x32xf32>
    %25 = vector.extract_strided_slice %23 {offsets = [0, 0], sizes = [8, 256], strides = [1, 1]} : vector<32x256xf32> to vector<8x256xf32>
    %c0_28 = arith.constant 0 : index
    %c0_29 = arith.constant 0 : index
    %c0_30 = arith.constant 0 : index
    %26 = vector.load %arg5[%c0_28, %c0_29, %c0_30] : memref<4x256x32xf32, #tpu.memory_space<vmem>>, vector<1x256x32xf32>
    %27 = vector.shape_cast %26 : vector<1x256x32xf32> to vector<256x32xf32>
    %cst_31 = arith.constant dense<0.000000e+00> : vector<8x32xf32>
    %28 = tpu.matmul %25, %27, %cst_31 {dimension_numbers = #tpu.dot_dimension_numbers<[1], [0], [0], [1], [0, 0, 1, 1], [], []>} : vector<8x256xf32>, vector<256x32xf32>, vector<8x32xf32> -> vector<8x32xf32>
    %29 = vector.broadcast %24 : vector<1x32xf32> to vector<8x32xf32>
    %30 = arith.addf %29, %28 : vector<8x32xf32>
    %31 = vector.extract_strided_slice %23 {offsets = [8, 0], sizes = [8, 256], strides = [1, 1]} : vector<32x256xf32> to vector<8x256xf32>
    %c1_32 = arith.constant 1 : index
    %c0_33 = arith.constant 0 : index
    %c0_34 = arith.constant 0 : index
    %32 = vector.load %arg5[%c1_32, %c0_33, %c0_34] : memref<4x256x32xf32, #tpu.memory_space<vmem>>, vector<1x256x32xf32>
    %33 = vector.shape_cast %32 : vector<1x256x32xf32> to vector<256x32xf32>
    %cst_35 = arith.constant dense<0.000000e+00> : vector<8x32xf32>
    %34 = tpu.matmul %31, %33, %cst_35 {dimension_numbers = #tpu.dot_dimension_numbers<[1], [0], [0], [1], [0, 0, 1, 1], [], []>} : vector<8x256xf32>, vector<256x32xf32>, vector<8x32xf32> -> vector<8x32xf32>
    %35 = arith.addf %30, %34 : vector<8x32xf32>
    %36 = vector.extract_strided_slice %23 {offsets = [16, 0], sizes = [8, 256], strides = [1, 1]} : vector<32x256xf32> to vector<8x256xf32>
    %c2_36 = arith.constant 2 : index
    %c0_37 = arith.constant 0 : index
    %c0_38 = arith.constant 0 : index
    %37 = vector.load %arg5[%c2_36, %c0_37, %c0_38] : memref<4x256x32xf32, #tpu.memory_space<vmem>>, vector<1x256x32xf32>
    %38 = vector.shape_cast %37 : vector<1x256x32xf32> to vector<256x32xf32>
    %cst_39 = arith.constant dense<0.000000e+00> : vector<8x32xf32>
    %39 = tpu.matmul %36, %38, %cst_39 {dimension_numbers = #tpu.dot_dimension_numbers<[1], [0], [0], [1], [0, 0, 1, 1], [], []>} : vector<8x256xf32>, vector<256x32xf32>, vector<8x32xf32> -> vector<8x32xf32>
    %40 = arith.addf %35, %39 : vector<8x32xf32>
    %41 = vector.extract_strided_slice %23 {offsets = [24, 0], sizes = [8, 256], strides = [1, 1]} : vector<32x256xf32> to vector<8x256xf32>
    %c3 = arith.constant 3 : index
    %c0_40 = arith.constant 0 : index
    %c0_41 = arith.constant 0 : index
    %42 = vector.load %arg5[%c3, %c0_40, %c0_41] : memref<4x256x32xf32, #tpu.memory_space<vmem>>, vector<1x256x32xf32>
    %43 = vector.shape_cast %42 : vector<1x256x32xf32> to vector<256x32xf32>
    %cst_42 = arith.constant dense<0.000000e+00> : vector<8x32xf32>
    %44 = tpu.matmul %41, %43, %cst_42 {dimension_numbers = #tpu.dot_dimension_numbers<[1], [0], [0], [1], [0, 0, 1, 1], [], []>} : vector<8x256xf32>, vector<256x32xf32>, vector<8x32xf32> -> vector<8x32xf32>
    %45 = arith.addf %40, %44 : vector<8x32xf32>
    %cst_43 = arith.constant 0.000000e+00 : f32
    %46 = vector.broadcast %cst_43 : f32 to vector<8x32xf32>
    %47 = arith.maximumf %45, %46 : vector<8x32xf32>
    %c0_44 = arith.constant 0 : index
    %c0_45 = arith.constant 0 : index
    %48 = vector.load %arg7[%c0_44, %c0_45] : memref<1x32xf32, #tpu.memory_space<vmem>>, vector<1x32xf32>
    %49 = vector.broadcast %48 : vector<1x32xf32> to vector<8x32xf32>
    %50 = arith.mulf %47, %49 : vector<8x32xf32>
    %cst_46 = arith.constant dense<0.000000e+00> : vector<8xf32>
    %51 = vector.multi_reduction <add>, %50, %cst_46 [1] : vector<8x32xf32> to vector<8xf32>
    %52 = vector.shape_cast %51 : vector<8xf32> to vector<8x1xf32>
    %c0_47 = arith.constant 0 : index
    %c0_48 = arith.constant 0 : index
    %53 = vector.load %arg8[%c0_47, %c0_48] : memref<1x1xf32, #tpu.memory_space<vmem>>, vector<1x1xf32>
    %54 = vector.broadcast %53 : vector<1x1xf32> to vector<8x1xf32>
    %55 = arith.addf %52, %54 : vector<8x1xf32>
    %56 = arith.negf %55 : vector<8x1xf32>
    %57 = math.exp %56 : vector<8x1xf32>
    %cst_49 = arith.constant 1.000000e+00 : f32
    %58 = vector.broadcast %cst_49 : f32 to vector<8x1xf32>
    %59 = arith.addf %58, %57 : vector<8x1xf32>
    %60 = arith.divf %58, %59 : vector<8x1xf32>
    %61 = tpu.iota {dimensions = array<i32: 0>} : vector<8x128xi32>
    %62 = tpu.iota {dimensions = array<i32: 1>} : vector<8x128xi32>
    %63 = arith.cmpi eq, %61, %62 : vector<8x128xi32>
    %cst_50 = arith.constant 0.000000e+00 : f32
    %64 = vector.shape_cast %60 : vector<8x1xf32> to vector<8x1xf32>
    %65 = vector.broadcast %64 : vector<8x1xf32> to vector<8x128xf32>
    %66 = vector.broadcast %cst_50 : f32 to vector<8x128xf32>
    %67 = arith.select %63, %65, %66 : vector<8x128xi1>, vector<8x128xf32>
    %cst_51 = arith.constant dense<0.000000e+00> : vector<128xf32>
    %68 = vector.multi_reduction <add>, %67, %cst_51 [0] : vector<8x128xf32> to vector<128xf32>
    %69 = vector.shape_cast %68 : vector<128xf32> to vector<1x128xf32>
    %c0_52 = arith.constant 0 : index
    %c0_53 = arith.constant 0 : index
    %c0_54 = arith.constant 0 : index
    %70 = vector.load %arg9[%c0_52, %c0_53, %c0_54] : memref<1x1x128xf32, #tpu.memory_space<vmem>>, vector<1x1x128xf32>
    %71 = vector.shape_cast %70 : vector<1x1x128xf32> to vector<1x128xf32>
    %72 = vector.shape_cast %69 : vector<1x128xf32> to vector<1x1x128xf32>
    tpu.vector_store %arg9[%c0_52, %c0_53, %c0_54], %72 {strides = array<i32>} : memref<1x1x128xf32, #tpu.memory_space<vmem>>, vector<1x1x128xf32>,
    return
  }
  func.func @transform_0(%arg0: i32) -> (i32, i32, i32, i32) {
    %c0_i32 = arith.constant 0 : i32
    %c0_i32_0 = arith.constant 0 : i32
    %c0_i32_1 = arith.constant 0 : i32
    %c0_i32_2 = arith.constant 0 : i32
    return %arg0, %c0_i32, %c0_i32_0, %c0_i32_1 : i32, i32, i32, i32
  }
  func.func @transform_1(%arg0: i32) -> (i32, i32, i32) {
    %c0_i32 = arith.constant 0 : i32
    %c0_i32_0 = arith.constant 0 : i32
    %c0_i32_1 = arith.constant 0 : i32
    %c0_i32_2 = arith.constant 0 : i32
    return %c0_i32, %c0_i32_0, %c0_i32_1 : i32, i32, i32
  }
  func.func @transform_2(%arg0: i32) -> (i32, i32) {
    %c0_i32 = arith.constant 0 : i32
    %c0_i32_0 = arith.constant 0 : i32
    %c0_i32_1 = arith.constant 0 : i32
    return %c0_i32, %c0_i32_0 : i32, i32
  }
  func.func @transform_3(%arg0: i32) -> (i32, i32) {
    %c0_i32 = arith.constant 0 : i32
    %c0_i32_0 = arith.constant 0 : i32
    %c0_i32_1 = arith.constant 0 : i32
    return %c0_i32, %c0_i32_0 : i32, i32
  }
  func.func @transform_4(%arg0: i32) -> (i32, i32, i32) {
    %c0_i32 = arith.constant 0 : i32
    %c0_i32_0 = arith.constant 0 : i32
    %c0_i32_1 = arith.constant 0 : i32
    %c0_i32_2 = arith.constant 0 : i32
    return %c0_i32, %c0_i32_0, %c0_i32_1 : i32, i32, i32
  }
  func.func @transform_5(%arg0: i32) -> (i32, i32) {
    %c0_i32 = arith.constant 0 : i32
    %c0_i32_0 = arith.constant 0 : i32
    %c0_i32_1 = arith.constant 0 : i32
    return %c0_i32, %c0_i32_0 : i32, i32
  }
  func.func @transform_6(%arg0: i32) -> (i32, i32) {
    %c0_i32 = arith.constant 0 : i32
    %c0_i32_0 = arith.constant 0 : i32
    %c0_i32_1 = arith.constant 0 : i32
    return %c0_i32, %c0_i32_0 : i32, i32
  }
  func.func @transform_7(%arg0: i32) -> (i32, i32) {
    %c0_i32 = arith.constant 0 : i32
    %c0_i32_0 = arith.constant 0 : i32
    %c0_i32_1 = arith.constant 0 : i32
    return %c0_i32, %c0_i32_0 : i32, i32
  }
  func.func @transform_8(%arg0: i32) -> (i32, i32, i32) {
    %c0_i32 = arith.constant 0 : i32
    %c0_i32_0 = arith.constant 0 : i32
    %c0_i32_1 = arith.constant 0 : i32
    return %arg0, %c0_i32, %c0_i32_0 : i32, i32, i32
  }
}

</mosaic_0001>

<llo_original>
// kernel: tile.8
$region0: #{tile.8}
  #allocation0 [shape = 's32[1]{0}', space=sflag, size = 0x4, scoped, tag = 'scoped memory for tile.8']
  %s0 = inlined_call_operand.vmem [shape: f32[16], index: 0, kind: input, shape index: {}]
  %s1 = inlined_call_operand.vmem [shape: f32[16,16], index: 1, kind: output, shape index: {}]
  // Predicated region
  $region2: #{tile.8} parent=0 // pred_check
    _
  $region3: #{tile.8} parent=0 // pred_check_branch
    %3 = sbr.rel (0) target = $region5
  $region4: #{tile.8} parent=0 // pred_region
    _
  $region5: #{tile.8} parent=0 // pred_fallthru
    _
  %v4 = vld [vmem:[%s0] ss:$0 sm:$0xff]
  %5 = vst [vmem:[%s1] sm:$0xff] %v4
  %s6 = scalar_lea.vmem %s1, 8
  %7 = vst [vmem:[%s6] sm:$0xff] %v4

// kernel: tile.9
$region0: #{tile.9}
  %s0 = inlined_call_operand.vmem [shape: f32[16,16], index: 0, kind: input, shape index: {}]
  %s1 = inlined_call_operand.vmem [shape: f32[1,256], index: 1, kind: output, shape index: {}]
  $region1: #{tile.9} parent=0
    #allocation0 [shape = 'u8[8192]{0}', space=vmem, size = 0x2000, scoped, tag = 'scoped mem for output reshape']
    %s2 = smov 3
    %v3 = vld [vmem:[%s0] ss:$8 sm:%s2]
    %vm4 = vcmask 130048
    %5 = vst.msk [vmem:[#allocation0] ss:$8 sm:$0x3] %vm4, %v3
    %s6 = scalar_lea.vmem %s0, 7
    %s7 = smov 3
    %v8 = vld [vmem:[%s6] ss:$8 sm:%s7]
    %9 = vrot.lane.b32.xlu0 %v8, 112
    %v10 = vpop.permute.xlu0 %9
    %vm11 = vcmask 1048448
    %12 = vst.msk [vmem:[#allocation0] ss:$8 sm:$0x3] %vm11, %v10
    %s13 = scalar_lea.vmem %s0, 6
    %s14 = smov 3
    %v15 = vld [vmem:[%s13] ss:$8 sm:%s14]
    %16 = vrot.lane.b32.xlu0 %v15, 96
    %v17 = vpop.permute.xlu0 %16
    %vm18 = vcmask 917248
    %19 = vst.msk [vmem:[#allocation0] ss:$8 sm:$0x3] %vm18, %v17
    %s20 = scalar_lea.vmem %s0, 5
    %s21 = smov 3
    %v22 = vld [vmem:[%s20] ss:$8 sm:%s21]
    %23 = vrot.lane.b32.xlu0 %v22, 80
    %v24 = vpop.permute.xlu0 %23
    %vm25 = vcmask 786048
    %26 = vst.msk [vmem:[#allocation0] ss:$8 sm:$0x3] %vm25, %v24
    %s27 = scalar_lea.vmem %s0, 4
    %s28 = smov 3
    %v29 = vld [vmem:[%s27] ss:$8 sm:%s28]
    %30 = vrot.lane.b32.xlu0 %v29, 64
    %v31 = vpop.permute.xlu0 %30
    %vm32 = vcmask 654848
    %33 = vst.msk [vmem:[#allocation0] ss:$8 sm:$0x3] %vm32, %v31
    %s34 = scalar_lea.vmem %s0, 3
    %s35 = smov 3
    %v36 = vld [vmem:[%s34] ss:$8 sm:%s35]
    %37 = vrot.lane.b32.xlu0 %v36, 48
    %v38 = vpop.permute.xlu0 %37
    %vm39 = vcmask 523648
    %40 = vst.msk [vmem:[#allocation0] ss:$8 sm:$0x3] %vm39, %v38
    %s41 = scalar_lea.vmem %s0, 2
    %s42 = smov 3
    %v43 = vld [vmem:[%s41] ss:$8 sm:%s42]
    %44 = vrot.lane.b32.xlu0 %v43, 32
    %v45 = vpop.permute.xlu0 %44
    %vm46 = vcmask 392448
    %47 = vst.msk [vmem:[#allocation0] ss:$8 sm:$0x3] %vm46, %v45
    %s48 = scalar_lea.vmem %s0, 1
    %s49 = smov 3
    %v50 = vld [vmem:[%s48] ss:$8 sm:%s49]
    %51 = vrot.lane.b32.xlu0 %v50, 16
    %v52 = vpop.permute.xlu0 %51
    %vm53 = vcmask 261248
    %54 = vst.msk [vmem:[#allocation0] ss:$8 sm:$0x3] %vm53, %v52
    %s56 = sshll.u32 1, 1
    %s57 = ssub.s32 %s56, 1
    %v59 = vld [vmem:[#allocation0] sm:%s57]
    %s60 = sshll.u32 1, 1
    %s61 = ssub.s32 %s60, 1
    %62 = vst [vmem:[%s1] sm:%s61] %v59
    %s63 = scalar_lea.vmem [#allocation0], 8
    %v64 = vld [vmem:[%s63] sm:%s57]
    %s65 = sshll.u32 1, 1
    %s66 = ssub.s32 %s65, 1
    %s67 = scalar_lea.vmem %s1, 1
    %68 = vst [vmem:[%s67] sm:%s66] %v64

// kernel: idrnd_liveness_v1_forward.1
$region0: #{idrnd_liveness_v1_forward.1}
  #allocation0 [shape = 'u32[]', space=smem, size = 0x4, offset = 0x4, fixed_abs, tag = 'smem constant byte address 0x4 - core index']
  #allocation1 [shape = 'u32[144,128]{1,0:T(1,128)}', space=vmem, size = 0x12000, scoped, tag = 'internal scratch']
  #allocation2 [shape = 'f32[1,1]{1,0:T(1,128)S(1)}', space=vmem, size = 0x200, scoped, tag = 'scoped memory for idrnd_liveness_v1_forward.1']
  %s0 = inlined_call_operand.vmem [shape: bf16[1,3,128,54], index: 0, kind: input, shape index: {}]
  %s1 = inlined_call_operand.vmem [shape: bf16[3,54,256], index: 1, kind: input, shape index: {}]
  %s2 = inlined_call_operand.vmem [shape: f32[1,256], index: 2, kind: input, shape index: {}]
  %s3 = inlined_call_operand.vmem [shape: f32[32,128], index: 3, kind: input, shape index: {}]
  %s4 = inlined_call_operand.vmem [shape: f32[4,256,32], index: 4, kind: input, shape index: {}]
  %s5 = inlined_call_operand.vmem [shape: f32[1,32], index: 5, kind: input, shape index: {}]
  %s6 = inlined_call_operand.vmem [shape: f32[1,32], index: 6, kind: input, shape index: {}]
  %s7 = inlined_call_operand.<no memory space> [shape: f32[1,1], index: 7, kind: input, shape index: {}]
  %s8 = inlined_call_operand.vmem [shape: f32[1,1,128], index: 8, kind: output, shape index: {}]
  %s9 = sld [smem:[#allocation0]]
  $region42: #{idrnd_liveness_v1_forward.1} parent=0
    _
  %s11 = ssub.s32 1, %s9
  %s12 = scalar_select 0, %s11, %s9
  %v13 = vstv %s7
  %14 = vst [vmem:[#allocation2] sm:$0x1] %v13
  // Predicated region
  $region2: #{idrnd_liveness_v1_forward.1} parent=0 // pred_check
    _
  $region3: #{idrnd_liveness_v1_forward.1} parent=0 // pred_check_branch
    %16 = sbr.rel (0) target = $region5
  $region4: #{idrnd_liveness_v1_forward.1} parent=0 // pred_region
    _
  $region5: #{idrnd_liveness_v1_forward.1} parent=0 // pred_fallthru
    _
  // Predicated region
  $region6: #{idrnd_liveness_v1_forward.1} parent=0 // pred_check
    _
  $region7: #{idrnd_liveness_v1_forward.1} parent=0 // pred_check_branch
    %18 = sbr.rel (0) target = $region9
  $region8: #{idrnd_liveness_v1_forward.1} parent=0 // pred_region
    _
  $region9: #{idrnd_liveness_v1_forward.1} parent=0 // pred_fallthru
    _
  // Predicated region
  $region10: #{idrnd_liveness_v1_forward.1} parent=0 // pred_check
    _
  $region11: #{idrnd_liveness_v1_forward.1} parent=0 // pred_check_branch
    %20 = sbr.rel (0) target = $region13
  $region12: #{idrnd_liveness_v1_forward.1} parent=0 // pred_region
    _
  $region13: #{idrnd_liveness_v1_forward.1} parent=0 // pred_fallthru
    _
  // Predicated region
  $region14: #{idrnd_liveness_v1_forward.1} parent=0 // pred_check
    _
  $region15: #{idrnd_liveness_v1_forward.1} parent=0 // pred_check_branch
    %22 = sbr.rel (0) target = $region17
  $region16: #{idrnd_liveness_v1_forward.1} parent=0 // pred_region
    _
  $region17: #{idrnd_liveness_v1_forward.1} parent=0 // pred_fallthru
    _
  // Predicated region
  $region18: #{idrnd_liveness_v1_forward.1} parent=0 // pred_check
    _
  $region19: #{idrnd_liveness_v1_forward.1} parent=0 // pred_check_branch
    %24 = sbr.rel (0) target = $region21
  $region20: #{idrnd_liveness_v1_forward.1} parent=0 // pred_region
    _
  $region21: #{idrnd_liveness_v1_forward.1} parent=0 // pred_fallthru
    _
  // Predicated region
  $region22: #{idrnd_liveness_v1_forward.1} parent=0 // pred_check
    _
  $region23: #{idrnd_liveness_v1_forward.1} parent=0 // pred_check_branch
    %26 = sbr.rel (0) target = $region25
  $region24: #{idrnd_liveness_v1_forward.1} parent=0 // pred_region
    _
  $region25: #{idrnd_liveness_v1_forward.1} parent=0 // pred_fallthru
    _
  // Predicated region
  $region26: #{idrnd_liveness_v1_forward.1} parent=0 // pred_check
    _
  $region27: #{idrnd_liveness_v1_forward.1} parent=0 // pred_check_branch
    %28 = sbr.rel (0) target = $region29
  $region28: #{idrnd_liveness_v1_forward.1} parent=0 // pred_region
    _
  $region29: #{idrnd_liveness_v1_forward.1} parent=0 // pred_fallthru
    _
  // Predicated region
  $region30: #{idrnd_liveness_v1_forward.1} parent=0 // pred_check
    _
  $region31: #{idrnd_liveness_v1_forward.1} parent=0 // pred_check_branch
    %30 = sbr.rel (0) target = $region33
  $region32: #{idrnd_liveness_v1_forward.1} parent=0 // pred_region
    _
  $region33: #{idrnd_liveness_v1_forward.1} parent=0 // pred_fallthru
    _
  %v32 = vld [vmem:[%s0] sm:$0xf]
  %v33 = vld [vmem:[%s0 + $0x4] sm:$0xf]
  %v34 = vld [vmem:[%s0 + $0x8] sm:$0xf]
  %v35 = vld [vmem:[%s0 + $0xc] sm:$0xf]
  %v36 = vld [vmem:[%s0 + $0x10] sm:$0xf]
  %v37 = vld [vmem:[%s0 + $0x14] sm:$0xf]
  %v38 = vld [vmem:[%s0 + $0x18] sm:$0xf]
  %v39 = vld [vmem:[%s0 + $0x1c] sm:$0xf]
  %v40 = vld [vmem:[%s0 + $0x20] sm:$0xf]
  %v41 = vld [vmem:[%s0 + $0x24] sm:$0xf]
  %v42 = vld [vmem:[%s0 + $0x28] sm:$0xf]
  %v43 = vld [vmem:[%s0 + $0x2c] sm:$0xf]
  %v44 = vld [vmem:[%s0 + $0x30] sm:$0xf]
  %v45 = vld [vmem:[%s0 + $0x34] sm:$0xf]
  %v46 = vld [vmem:[%s0 + $0x38] sm:$0xf]
  %v47 = vld [vmem:[%s0 + $0x3c] sm:$0xf]
  %v48 = vld [vmem:[%s1] sm:$0xff]
  %v49 = vld [vmem:[%s1 + $0x8] sm:$0xff]
  %v50 = vld [vmem:[%s1 + $0x10] sm:$0xff]
  %v51 = vld [vmem:[%s1 + $0x18] sm:$0xff]
  %v52 = vld [vmem:[%s1 + $0x20] sm:$0xff]
  %v53 = vld [vmem:[%s1 + $0x28] sm:$0xff]
  %v54 = vld [vmem:[%s1 + $0x30] sm:$0x77]
  %s55 = scalar_lea.vmem %s0, 64
  %v56 = vld [vmem:[%s55] sm:$0xf]
  %v57 = vld [vmem:[%s55 + $0x4] sm:$0xf]
  %v58 = vld [vmem:[%s55 + $0x8] sm:$0xf]
  %v59 = vld [vmem:[%s55 + $0xc] sm:$0xf]
  %v60 = vld [vmem:[%s55 + $0x10] sm:$0xf]
  %v61 = vld [vmem:[%s55 + $0x14] sm:$0xf]
  %v62 = vld [vmem:[%s55 + $0x18] sm:$0xf]
  %v63 = vld [vmem:[%s55 + $0x1c] sm:$0xf]
  %v64 = vld [vmem:[%s55 + $0x20] sm:$0xf]
  %v65 = vld [vmem:[%s55 + $0x24] sm:$0xf]
  %v66 = vld [vmem:[%s55 + $0x28] sm:$0xf]
  %v67 = vld [vmem:[%s55 + $0x2c] sm:$0xf]
  %v68 = vld [vmem:[%s55 + $0x30] sm:$0xf]
  %v69 = vld [vmem:[%s55 + $0x34] sm:$0xf]
  %v70 = vld [vmem:[%s55 + $0x38] sm:$0xf]
  %v71 = vld [vmem:[%s55 + $0x3c] sm:$0xf]
  %s72 = scalar_lea.vmem %s1, 56
  %v73 = vld [vmem:[%s72] sm:$0xff]
  %v74 = vld [vmem:[%s72 + $0x8] sm:$0xff]
  %v75 = vld [vmem:[%s72 + $0x10] sm:$0xff]
  %v76 = vld [vmem:[%s72 + $0x18] sm:$0xff]
  %v77 = vld [vmem:[%s72 + $0x20] sm:$0xff]
  %v78 = vld [vmem:[%s72 + $0x28] sm:$0xff]
  %v79 = vld [vmem:[%s72 + $0x30] sm:$0x77]
  %v96 = vunpack.c.l.b16 %v56
  %v97 = vunpack.c.l.b16 %v57
  %v98 = vunpack.c.l.b16 %v58
  %v99 = vunpack.c.l.b16 %v59
  %v100 = vunpack.c.l.b16 %v60
  %v101 = vunpack.c.l.b16 %v61
  %v102 = vunpack.c.l.b16 %v62
  %v103 = vunpack.c.l.b16 %v63
  %v104 = vunpack.c.l.b16 %v64
  %v105 = vunpack.c.l.b16 %v65
  %v106 = vunpack.c.l.b16 %v66
  %v107 = vunpack.c.l.b16 %v67
  %v108 = vunpack.c.l.b16 %v68
  %v109 = vunpack.c.l.b16 %v69
  %v110 = vunpack.c.l.b16 %v70
  %v111 = vunpack.c.l.b16 %v71
  %v112 = vpack.c.b16 %v97, %v96
  %v113 = vpack.c.b16 %v99, %v98
  %v114 = vpack.c.b16 %v101, %v100
  %v115 = vpack.c.b16 %v103, %v102
  %v116 = vpack.c.b16 %v105, %v104
  %v117 = vpack.c.b16 %v107, %v106
  %v118 = vpack.c.b16 %v109, %v108
  %v119 = vpack.c.b16 %v111, %v110
  %v127 = vunpack.c.l.b16 %v73
  %v128 = vunpack.c.h.b16 %v73
  %v129 = vunpack.c.l.b16 %v74
  %v130 = vunpack.c.h.b16 %v74
  %v131 = vunpack.c.l.b16 %v75
  %v132 = vunpack.c.h.b16 %v75
  %v133 = vunpack.c.l.b16 %v76
  %v134 = vunpack.c.h.b16 %v76
  %v135 = vunpack.c.l.b16 %v77
  %v136 = vunpack.c.h.b16 %v77
  %v137 = vunpack.c.l.b16 %v78
  %v138 = vunpack.c.h.b16 %v78
  %v139 = vunpack.c.l.b16 %v79
  %v140 = vunpack.c.h.b16 %v79
  %v141 = vpack.c.b16 %v129, %v127
  %v142 = vpack.c.b16 %v130, %v128
  %v143 = vpack.c.b16 %v133, %v131
  %v144 = vpack.c.b16 %v134, %v132
  %v145 = vpack.c.b16 %v137, %v135
  %v146 = vpack.c.b16 %v138, %v136
  %v147 = vpack.c.b16 %v139, %v139
  %v148 = vpack.c.b16 %v140, %v140
  %vm155 = vcmask 441344
  %v157 = vsel %vm155, %v112, 0
  %v160 = vsel %vm155, %v113, 0
  %v163 = vsel %vm155, %v114, 0
  %v166 = vsel %vm155, %v115, 0
  %v169 = vsel %vm155, %v116, 0
  %v172 = vsel %vm155, %v117, 0
  %v175 = vsel %vm155, %v118, 0
  %v178 = vsel %vm155, %v119, 0
  %vm180 = vcmask 1042432
  %v182 = vsel %vm180, %v147, 0
  %v185 = vsel %vm180, %v148, 0
  %187 = vmatprep.subr.bf16.mxu0 0
  %188 = vmatpush1.bf16.msra.mxu0 0
  %189 = vmatprep.subr.bf16.mxu0 0
  %190 = vmatpush1.bf16.msra.mxu0 0
  %191 = vmatprep.subr.bf16.mxu0 0
  %192 = vmatpush1.bf16.msra.mxu0 0
  %193 = vmatprep.subr.bf16.mxu0 0
  %194 = vmatpush1.bf16.msra.mxu0 0
  %195 = vmatprep.subr.bf16.mxu0 %v185
  %196 = vmatpush1.bf16.msra.mxu0 %v182
  %197 = vmatprep.subr.bf16.mxu0 %v146
  %198 = vmatpush1.bf16.msra.mxu0 %v145
  %199 = vmatprep.subr.bf16.mxu0 %v144
  %200 = vmatpush1.bf16.msra.mxu0 %v143
  %201 = vmatprep.subr.bf16.mxu0 %v142
  %202 = vmatpush1.bf16.msra.mxu0 %v141
  %203 = vmatprep.subr.bf16.mxu0 0
  %204 = vmatpush2.bf16.msra.mxu0 0
  %205 = vmatprep.subr.bf16.mxu0 0
  %206 = vmatpush2.bf16.msra.mxu0 0
  %207 = vmatprep.subr.bf16.mxu0 0
  %208 = vmatpush2.bf16.msra.mxu0 0
  %209 = vmatprep.subr.bf16.mxu0 0
  %210 = vmatpush2.bf16.msra.mxu0 0
  %211 = vmatprep.subr.bf16.mxu0 0
  %212 = vmatpush2.bf16.msra.mxu0 0
  %213 = vmatprep.subr.bf16.mxu0 0
  %214 = vmatpush2.bf16.msra.mxu0 0
  %215 = vmatprep.subr.bf16.mxu0 0
  %216 = vmatpush2.bf16.msra.mxu0 0
  %217 = vmatprep.subr.bf16.mxu0 0
  %218 = vmatpush2.bf16.msra.mxu0 0
  %219 = vmatprep.mubr.bf16.mxu0 0
  %220 = vmatmul.mubr.bf16.gmra.mxu0 %v157
  %v221 = vpop.f32.mrf.mxu0
  %v222 = vadd.f32 0.0, %v221
  %v223 = vpop.f32.mrf.mxu0
  %v224 = vadd.f32 0.0, %v223
  %v225 = vpop.f32.mrf.mxu0
  %v226 = vadd.f32 0.0, %v225
  %v227 = vpop.f32.mrf.mxu0
  %v228 = vadd.f32 0.0, %v227
  %229 = vmatprep.mubr.bf16.mxu0 0
  %230 = vmatmul.mubr.bf16.gmra.mxu0 %v160
  %v231 = vpop.f32.mrf.mxu0
  %v232 = vadd.f32 0.0, %v231
  %v233 = vpop.f32.mrf.mxu0
  %v234 = vadd.f32 0.0, %v233
  %v235 = vpop.f32.mrf.mxu0
  %v236 = vadd.f32 0.0, %v235
  %v237 = vpop.f32.mrf.mxu0
  %v238 = vadd.f32 0.0, %v237
  %239 = vmatprep.mubr.bf16.mxu0 0
  %240 = vmatmul.mubr.bf16.gmra.mxu0 %v163
  %v241 = vpop.f32.mrf.mxu0
  %v242 = vadd.f32 0.0, %v241
  %v243 = vpop.f32.mrf.mxu0
  %v244 = vadd.f32 0.0, %v243
  %v245 = vpop.f32.mrf.mxu0
  %v246 = vadd.f32 0.0, %v245
  %v247 = vpop.f32.mrf.mxu0
  %v248 = vadd.f32 0.0, %v247
  %249 = vmatprep.mubr.bf16.mxu0 0
  %250 = vmatmul.mubr.bf16.gmra.mxu0 %v166
  %v251 = vpop.f32.mrf.mxu0
  %v252 = vadd.f32 0.0, %v251
  %v253 = vpop.f32.mrf.mxu0
  %v254 = vadd.f32 0.0, %v253
  %v255 = vpop.f32.mrf.mxu0
  %v256 = vadd.f32 0.0, %v255
  %v257 = vpop.f32.mrf.mxu0
  %v258 = vadd.f32 0.0, %v257
  %259 = vmatprep.mubr.bf16.mxu0 0
  %260 = vmatmul.mubr.bf16.gmra.mxu0 %v169
  %v261 = vpop.f32.mrf.mxu0
  %v262 = vadd.f32 0.0, %v261
  %v263 = vpop.f32.mrf.mxu0
  %v264 = vadd.f32 0.0, %v263
  %v265 = vpop.f32.mrf.mxu0
  %v266 = vadd.f32 0.0, %v265
  %v267 = vpop.f32.mrf.mxu0
  %v268 = vadd.f32 0.0, %v267
  %269 = vmatprep.mubr.bf16.mxu0 0
  %270 = vmatmul.mubr.bf16.gmra.mxu0 %v172
  %v271 = vpop.f32.mrf.mxu0
  %v272 = vadd.f32 0.0, %v271
  %v273 = vpop.f32.mrf.mxu0
  %v274 = vadd.f32 0.0, %v273
  %v275 = vpop.f32.mrf.mxu0
  %v276 = vadd.f32 0.0, %v275
  %v277 = vpop.f32.mrf.mxu0
  %v278 = vadd.f32 0.0, %v277
  %279 = vmatprep.mubr.bf16.mxu0 0
  %280 = vmatmul.mubr.bf16.gmra.mxu0 %v175
  %v281 = vpop.f32.mrf.mxu0
  %v282 = vadd.f32 0.0, %v281
  %v283 = vpop.f32.mrf.mxu0
  %v284 = vadd.f32 0.0, %v283
  %v285 = vpop.f32.mrf.mxu0
  %v286 = vadd.f32 0.0, %v285
  %v287 = vpop.f32.mrf.mxu0
  %v288 = vadd.f32 0.0, %v287
  %289 = vmatprep.mubr.bf16.mxu0 0
  %290 = vmatmul.mubr.bf16.gmra.mxu0 %v178
  %v291 = vpop.f32.mrf.mxu0
  %v292 = vadd.f32 0.0, %v291
  %v293 = vpop.f32.mrf.mxu0
  %v294 = vadd.f32 0.0, %v293
  %v295 = vpop.f32.mrf.mxu0
  %v296 = vadd.f32 0.0, %v295
  %v297 = vpop.f32.mrf.mxu0
  %v298 = vadd.f32 0.0, %v297
  %299 = vdwg.mxu0
  %v316 = vunpack.c.l.b16 %v32
  %v317 = vunpack.c.l.b16 %v33
  %v318 = vunpack.c.l.b16 %v34
  %v319 = vunpack.c.l.b16 %v35
  %v320 = vunpack.c.l.b16 %v36
  %v321 = vunpack.c.l.b16 %v37
  %v322 = vunpack.c.l.b16 %v38
  %v323 = vunpack.c.l.b16 %v39
  %v324 = vunpack.c.l.b16 %v40
  %v325 = vunpack.c.l.b16 %v41
  %v326 = vunpack.c.l.b16 %v42
  %v327 = vunpack.c.l.b16 %v43
  %v328 = vunpack.c.l.b16 %v44
  %v329 = vunpack.c.l.b16 %v45
  %v330 = vunpack.c.l.b16 %v46
  %v331 = vunpack.c.l.b16 %v47
  %v332 = vpack.c.b16 %v317, %v316
  %v333 = vpack.c.b16 %v319, %v318
  %v334 = vpack.c.b16 %v321, %v320
  %v335 = vpack.c.b16 %v323, %v322
  %v336 = vpack.c.b16 %v325, %v324
  %v337 = vpack.c.b16 %v327, %v326
  %v338 = vpack.c.b16 %v329, %v328
  %v339 = vpack.c.b16 %v331, %v330
  %v347 = vunpack.c.l.b16 %v48
  %v348 = vunpack.c.h.b16 %v48
  %v349 = vunpack.c.l.b16 %v49
  %v350 = vunpack.c.h.b16 %v49
  %v351 = vunpack.c.l.b16 %v50
  %v352 = vunpack.c.h.b16 %v50
  %v353 = vunpack.c.l.b16 %v51
  %v354 = vunpack.c.h.b16 %v51
  %v355 = vunpack.c.l.b16 %v52
  %v356 = vunpack.c.h.b16 %v52
  %v357 = vunpack.c.l.b16 %v53
  %v358 = vunpack.c.h.b16 %v53
  %v359 = vunpack.c.l.b16 %v54
  %v360 = vunpack.c.h.b16 %v54
  %v361 = vpack.c.b16 %v349, %v347
  %v362 = vpack.c.b16 %v350, %v348
  %v363 = vpack.c.b16 %v353, %v351
  %v364 = vpack.c.b16 %v354, %v352
  %v365 = vpack.c.b16 %v357, %v355
  %v366 = vpack.c.b16 %v358, %v356
  %v367 = vpack.c.b16 %v359, %v359
  %v368 = vpack.c.b16 %v360, %v360
  %v376 = vsel %vm155, %v332, 0
  %v379 = vsel %vm155, %v333, 0
  %v382 = vsel %vm155, %v334, 0
  %v385 = vsel %vm155, %v335, 0
  %v388 = vsel %vm155, %v336, 0
  %v391 = vsel %vm155, %v337, 0
  %v394 = vsel %vm155, %v338, 0
  %v397 = vsel %vm155, %v339, 0
  %v400 = vsel %vm180, %v367, 0
  %v403 = vsel %vm180, %v368, 0
  %405 = vmatprep.subr.bf16.mxu0 0
  %406 = vmatpush1.bf16.msra.mxu0 0
  %407 = vmatprep.subr.bf16.mxu0 0
  %408 = vmatpush1.bf16.msra.mxu0 0
  %409 = vmatprep.subr.bf16.mxu0 0
  %410 = vmatpush1.bf16.msra.mxu0 0
  %411 = vmatprep.subr.bf16.mxu0 0
  %412 = vmatpush1.bf16.msra.mxu0 0
  %413 = vmatprep.subr.bf16.mxu0 %v403
  %414 = vmatpush1.bf16.msra.mxu0 %v400
  %415 = vmatprep.subr.bf16.mxu0 %v366
  %416 = vmatpush1.bf16.msra.mxu0 %v365
  %417 = vmatprep.subr.bf16.mxu0 %v364
  %418 = vmatpush1.bf16.msra.mxu0 %v363
  %419 = vmatprep.subr.bf16.mxu0 %v362
  %420 = vmatpush1.bf16.msra.mxu0 %v361
  %421 = vmatprep.subr.bf16.mxu0 0
  %422 = vmatpush2.bf16.msra.mxu0 0
  %423 = vmatprep.subr.bf16.mxu0 0
  %424 = vmatpush2.bf16.msra.mxu0 0
  %425 = vmatprep.subr.bf16.mxu0 0
  %426 = vmatpush2.bf16.msra.mxu0 0
  %427 = vmatprep.subr.bf16.mxu0 0
  %428 = vmatpush2.bf16.msra.mxu0 0
  %429 = vmatprep.subr.bf16.mxu0 0
  %430 = vmatpush2.bf16.msra.mxu0 0
  %431 = vmatprep.subr.bf16.mxu0 0
  %432 = vmatpush2.bf16.msra.mxu0 0
  %433 = vmatprep.subr.bf16.mxu0 0
  %434 = vmatpush2.bf16.msra.mxu0 0
  %435 = vmatprep.subr.bf16.mxu0 0
  %436 = vmatpush2.bf16.msra.mxu0 0
  %437 = vmatprep.mubr.bf16.mxu0 0
  %438 = vmatmul.mubr.bf16.gmra.mxu0 %v376
  %v439 = vpop.f32.mrf.mxu0
  %v440 = vadd.f32 %v222, %v439
  %v441 = vpop.f32.mrf.mxu0
  %v442 = vadd.f32 %v224, %v441
  %v443 = vpop.f32.mrf.mxu0
  %v444 = vadd.f32 %v226, %v443
  %v445 = vpop.f32.mrf.mxu0
  %v446 = vadd.f32 %v228, %v445
  %447 = vmatprep.mubr.bf16.mxu0 0
  %448 = vmatmul.mubr.bf16.gmra.mxu0 %v379
  %v449 = vpop.f32.mrf.mxu0
  %v450 = vadd.f32 %v232, %v449
  %v451 = vpop.f32.mrf.mxu0
  %v452 = vadd.f32 %v234, %v451
  %v453 = vpop.f32.mrf.mxu0
  %v454 = vadd.f32 %v236, %v453
  %v455 = vpop.f32.mrf.mxu0
  %v456 = vadd.f32 %v238, %v455
  %457 = vmatprep.mubr.bf16.mxu0 0
  %458 = vmatmul.mubr.bf16.gmra.mxu0 %v382
  %v459 = vpop.f32.mrf.mxu0
  %v460 = vadd.f32 %v242, %v459
  %v461 = vpop.f32.mrf.mxu0
  %v462 = vadd.f32 %v244, %v461
  %v463 = vpop.f32.mrf.mxu0
  %v464 = vadd.f32 %v246, %v463
  %v465 = vpop.f32.mrf.mxu0
  %v466 = vadd.f32 %v248, %v465
  %467 = vmatprep.mubr.bf16.mxu0 0
  %468 = vmatmul.mubr.bf16.gmra.mxu0 %v385
  %v469 = vpop.f32.mrf.mxu0
  %v470 = vadd.f32 %v252, %v469
  %v471 = vpop.f32.mrf.mxu0
  %v472 = vadd.f32 %v254, %v471
  %v473 = vpop.f32.mrf.mxu0
  %v474 = vadd.f32 %v256, %v473
  %v475 = vpop.f32.mrf.mxu0
  %v476 = vadd.f32 %v258, %v475
  %477 = vmatprep.mubr.bf16.mxu0 0
  %478 = vmatmul.mubr.bf16.gmra.mxu0 %v388
  %v479 = vpop.f32.mrf.mxu0
  %v480 = vadd.f32 %v262, %v479
  %v481 = vpop.f32.mrf.mxu0
  %v482 = vadd.f32 %v264, %v481
  %v483 = vpop.f32.mrf.mxu0
  %v484 = vadd.f32 %v266, %v483
  %v485 = vpop.f32.mrf.mxu0
  %v486 = vadd.f32 %v268, %v485
  %487 = vmatprep.mubr.bf16.mxu0 0
  %488 = vmatmul.mubr.bf16.gmra.mxu0 %v391
  %v489 = vpop.f32.mrf.mxu0
  %v490 = vadd.f32 %v272, %v489
  %v491 = vpop.f32.mrf.mxu0
  %v492 = vadd.f32 %v274, %v491
  %v493 = vpop.f32.mrf.mxu0
  %v494 = vadd.f32 %v276, %v493
  %v495 = vpop.f32.mrf.mxu0
  %v496 = vadd.f32 %v278, %v495
  %497 = vmatprep.mubr.bf16.mxu0 0
  %498 = vmatmul.mubr.bf16.gmra.mxu0 %v394
  %v499 = vpop.f32.mrf.mxu0
  %v500 = vadd.f32 %v282, %v499
  %v501 = vpop.f32.mrf.mxu0
  %v502 = vadd.f32 %v284, %v501
  %v503 = vpop.f32.mrf.mxu0
  %v504 = vadd.f32 %v286, %v503
  %v505 = vpop.f32.mrf.mxu0
  %v506 = vadd.f32 %v288, %v505
  %507 = vmatprep.mubr.bf16.mxu0 0
  %508 = vmatmul.mubr.bf16.gmra.mxu0 %v397
  %v509 = vpop.f32.mrf.mxu0
  %v510 = vadd.f32 %v292, %v509
  %v511 = vpop.f32.mrf.mxu0
  %v512 = vadd.f32 %v294, %v511
  %v513 = vpop.f32.mrf.mxu0
  %v514 = vadd.f32 %v296, %v513
  %v515 = vpop.f32.mrf.mxu0
  %v516 = vadd.f32 %v298, %v515
  %517 = vdwg.mxu0
  %s518 = scalar_lea.vmem %s0, 128
  %v519 = vld [vmem:[%s518] sm:$0xf]
  %v520 = vld [vmem:[%s518 + $0x4] sm:$0xf]
  %v521 = vld [vmem:[%s518 + $0x8] sm:$0xf]
  %v522 = vld [vmem:[%s518 + $0xc] sm:$0xf]
  %v523 = vld [vmem:[%s518 + $0x10] sm:$0xf]
  %v524 = vld [vmem:[%s518 + $0x14] sm:$0xf]
  %v525 = vld [vmem:[%s518 + $0x18] sm:$0xf]
  %v526 = vld [vmem:[%s518 + $0x1c] sm:$0xf]
  %v527 = vld [vmem:[%s518 + $0x20] sm:$0xf]
  %v528 = vld [vmem:[%s518 + $0x24] sm:$0xf]
  %v529 = vld [vmem:[%s518 + $0x28] sm:$0xf]
  %v530 = vld [vmem:[%s518 + $0x2c] sm:$0xf]
  %v531 = vld [vmem:[%s518 + $0x30] sm:$0xf]
  %v532 = vld [vmem:[%s518 + $0x34] sm:$0xf]
  %v533 = vld [vmem:[%s518 + $0x38] sm:$0xf]
  %v534 = vld [vmem:[%s518 + $0x3c] sm:$0xf]
  %s535 = scalar_lea.vmem %s1, 112
  %v536 = vld [vmem:[%s535] sm:$0xff]
  %v537 = vld [vmem:[%s535 + $0x8] sm:$0xff]
  %v538 = vld [vmem:[%s535 + $0x10] sm:$0xff]
  %v539 = vld [vmem:[%s535 + $0x18] sm:$0xff]
  %v540 = vld [vmem:[%s535 + $0x20] sm:$0xff]
  %v541 = vld [vmem:[%s535 + $0x28] sm:$0xff]
  %v542 = vld [vmem:[%s535 + $0x30] sm:$0x77]
  %v559 = vunpack.c.l.b16 %v519
  %v560 = vunpack.c.l.b16 %v520
  %v561 = vunpack.c.l.b16 %v521
  %v562 = vunpack.c.l.b16 %v522
  %v563 = vunpack.c.l.b16 %v523
  %v564 = vunpack.c.l.b16 %v524
  %v565 = vunpack.c.l.b16 %v525
  %v566 = vunpack.c.l.b16 %v526
  %v567 = vunpack.c.l.b16 %v527
  %v568 = vunpack.c.l.b16 %v528
  %v569 = vunpack.c.l.b16 %v529
  %v570 = vunpack.c.l.b16 %v530
  %v571 = vunpack.c.l.b16 %v531
  %v572 = vunpack.c.l.b16 %v532
  %v573 = vunpack.c.l.b16 %v533
  %v574 = vunpack.c.l.b16 %v534
  %v575 = vpack.c.b16 %v560, %v559
  %v576 = vpack.c.b16 %v562, %v561
  %v577 = vpack.c.b16 %v564, %v563
  %v578 = vpack.c.b16 %v566, %v565
  %v579 = vpack.c.b16 %v568, %v567
  %v580 = vpack.c.b16 %v570, %v569
  %v581 = vpack.c.b16 %v572, %v571
  %v582 = vpack.c.b16 %v574, %v573
  %v590 = vunpack.c.l.b16 %v536
  %v591 = vunpack.c.h.b16 %v536
  %v592 = vunpack.c.l.b16 %v537
  %v593 = vunpack.c.h.b16 %v537
  %v594 = vunpack.c.l.b16 %v538
  %v595 = vunpack.c.h.b16 %v538
  %v596 = vunpack.c.l.b16 %v539
  %v597 = vunpack.c.h.b16 %v539
  %v598 = vunpack.c.l.b16 %v540
  %v599 = vunpack.c.h.b16 %v540
  %v600 = vunpack.c.l.b16 %v541
  %v601 = vunpack.c.h.b16 %v541
  %v602 = vunpack.c.l.b16 %v542
  %v603 = vunpack.c.h.b16 %v542
  %v604 = vpack.c.b16 %v592, %v590
  %v605 = vpack.c.b16 %v593, %v591
  %v606 = vpack.c.b16 %v596, %v594
  %v607 = vpack.c.b16 %v597, %v595
  %v608 = vpack.c.b16 %v600, %v598
  %v609 = vpack.c.b16 %v601, %v599
  %v610 = vpack.c.b16 %v602, %v602
  %v611 = vpack.c.b16 %v603, %v603
  %v619 = vsel %vm155, %v575, 0
  %v622 = vsel %vm155, %v576, 0
  %v625 = vsel %vm155, %v577, 0
  %v628 = vsel %vm155, %v578, 0
  %v631 = vsel %vm155, %v579, 0
  %v634 = vsel %vm155, %v580, 0
  %v637 = vsel %vm155, %v581, 0
  %v640 = vsel %vm155, %v582, 0
  %v643 = vsel %vm180, %v610, 0
  %v646 = vsel %vm180, %v611, 0
  %648 = vmatprep.subr.bf16.mxu0 0
  %649 = vmatpush1.bf16.msra.mxu0 0
  %650 = vmatprep.subr.bf16.mxu0 0
  %651 = vmatpush1.bf16.msra.mxu0 0
  %652 = vmatprep.subr.bf16.mxu0 0
  %653 = vmatpush1.bf16.msra.mxu0 0
  %654 = vmatprep.subr.bf16.mxu0 0
  %655 = vmatpush1.bf16.msra.mxu0 0
  %656 = vmatprep.subr.bf16.mxu0 %v646
  %657 = vmatpush1.bf16.msra.mxu0 %v643
  %658 = vmatprep.subr.bf16.mxu0 %v609
  %659 = vmatpush1.bf16.msra.mxu0 %v608
  %660 = vmatprep.subr.bf16.mxu0 %v607
  %661 = vmatpush1.bf16.msra.mxu0 %v606
  %662 = vmatprep.subr.bf16.mxu0 %v605
  %663 = vmatpush1.bf16.msra.mxu0 %v604
  %664 = vmatprep.subr.bf16.mxu0 0
  %665 = vmatpush2.bf16.msra.mxu0 0
  %666 = vmatprep.subr.bf16.mxu0 0
  %667 = vmatpush2.bf16.msra.mxu0 0
  %668 = vmatprep.subr.bf16.mxu0 0
  %669 = vmatpush2.bf16.msra.mxu0 0
  %670 = vmatprep.subr.bf16.mxu0 0
  %671 = vmatpush2.bf16.msra.mxu0 0
  %672 = vmatprep.subr.bf16.mxu0 0
  %673 = vmatpush2.bf16.msra.mxu0 0
  %674 = vmatprep.subr.bf16.mxu0 0
  %675 = vmatpush2.bf16.msra.mxu0 0
  %676 = vmatprep.subr.bf16.mxu0 0
  %677 = vmatpush2.bf16.msra.mxu0 0
  %678 = vmatprep.subr.bf16.mxu0 0
  %679 = vmatpush2.bf16.msra.mxu0 0
  %680 = vmatprep.mubr.bf16.mxu0 0
  %681 = vmatmul.mubr.bf16.gmra.mxu0 %v619
  %v682 = vpop.f32.mrf.mxu0
  %v683 = vadd.f32 0.0, %v682
  %v684 = vpop.f32.mrf.mxu0
  %v685 = vadd.f32 0.0, %v684
  %v686 = vpop.f32.mrf.mxu0
  %v687 = vadd.f32 0.0, %v686
  %v688 = vpop.f32.mrf.mxu0
  %v689 = vadd.f32 0.0, %v688
  %690 = vmatprep.mubr.bf16.mxu0 0
  %691 = vmatmul.mubr.bf16.gmra.mxu0 %v622
  %v692 = vpop.f32.mrf.mxu0
  %v693 = vadd.f32 0.0, %v692
  %v694 = vpop.f32.mrf.mxu0
  %v695 = vadd.f32 0.0, %v694
  %v696 = vpop.f32.mrf.mxu0
  %v697 = vadd.f32 0.0, %v696
  %v698 = vpop.f32.mrf.mxu0
  %v699 = vadd.f32 0.0, %v698
  %700 = vmatprep.mubr.bf16.mxu0 0
  %701 = vmatmul.mubr.bf16.gmra.mxu0 %v625
  %v702 = vpop.f32.mrf.mxu0
  %v703 = vadd.f32 0.0, %v702
  %v704 = vpop.f32.mrf.mxu0
  %v705 = vadd.f32 0.0, %v704
  %v706 = vpop.f32.mrf.mxu0
  %v707 = vadd.f32 0.0, %v706
  %v708 = vpop.f32.mrf.mxu0
  %v709 = vadd.f32 0.0, %v708
  %710 = vmatprep.mubr.bf16.mxu0 0
  %711 = vmatmul.mubr.bf16.gmra.mxu0 %v628
  %v712 = vpop.f32.mrf.mxu0
  %v713 = vadd.f32 0.0, %v712
  %v714 = vpop.f32.mrf.mxu0
  %v715 = vadd.f32 0.0, %v714
  %v716 = vpop.f32.mrf.mxu0
  %v717 = vadd.f32 0.0, %v716
  %v718 = vpop.f32.mrf.mxu0
  %v719 = vadd.f32 0.0, %v718
  %720 = vmatprep.mubr.bf16.mxu0 0
  %721 = vmatmul.mubr.bf16.gmra.mxu0 %v631
  %v722 = vpop.f32.mrf.mxu0
  %v723 = vadd.f32 0.0, %v722
  %v724 = vpop.f32.mrf.mxu0
  %v725 = vadd.f32 0.0, %v724
  %v726 = vpop.f32.mrf.mxu0
  %v727 = vadd.f32 0.0, %v726
  %v728 = vpop.f32.mrf.mxu0
  %v729 = vadd.f32 0.0, %v728
  %730 = vmatprep.mubr.bf16.mxu0 0
  %731 = vmatmul.mubr.bf16.gmra.mxu0 %v634
  %v732 = vpop.f32.mrf.mxu0
  %v733 = vadd.f32 0.0, %v732
  %v734 = vpop.f32.mrf.mxu0
  %v735 = vadd.f32 0.0, %v734
  %v736 = vpop.f32.mrf.mxu0
  %v737 = vadd.f32 0.0, %v736
  %v738 = vpop.f32.mrf.mxu0
  %v739 = vadd.f32 0.0, %v738
  %740 = vmatprep.mubr.bf16.mxu0 0
  %741 = vmatmul.mubr.bf16.gmra.mxu0 %v637
  %v742 = vpop.f32.mrf.mxu0
  %v743 = vadd.f32 0.0, %v742
  %v744 = vpop.f32.mrf.mxu0
  %v745 = vadd.f32 0.0, %v744
  %v746 = vpop.f32.mrf.mxu0
  %v747 = vadd.f32 0.0, %v746
  %v748 = vpop.f32.mrf.mxu0
  %v749 = vadd.f32 0.0, %v748
  %750 = vmatprep.mubr.bf16.mxu0 0
  %751 = vmatmul.mubr.bf16.gmra.mxu0 %v640
  %v752 = vpop.f32.mrf.mxu0
  %v753 = vadd.f32 0.0, %v752
  %v754 = vpop.f32.mrf.mxu0
  %v755 = vadd.f32 0.0, %v754
  %v756 = vpop.f32.mrf.mxu0
  %v757 = vadd.f32 0.0, %v756
  %v758 = vpop.f32.mrf.mxu0
  %v759 = vadd.f32 0.0, %v758
  %760 = vdwg.mxu0
  %v761 = vadd.f32 %v440, %v683
  %v762 = vadd.f32 %v442, %v685
  %v763 = vadd.f32 %v444, %v687
  %v764 = vadd.f32 %v446, %v689
  %v765 = vadd.f32 %v450, %v693
  %v766 = vadd.f32 %v452, %v695
  %v767 = vadd.f32 %v454, %v697
  %v768 = vadd.f32 %v456, %v699
  %v769 = vadd.f32 %v460, %v703
  %v770 = vadd.f32 %v462, %v705
  %v771 = vadd.f32 %v464, %v707
  %v772 = vadd.f32 %v466, %v709
  %v773 = vadd.f32 %v470, %v713
  %v774 = vadd.f32 %v472, %v715
  %v775 = vadd.f32 %v474, %v717
  %v776 = vadd.f32 %v476, %v719
  %v777 = vadd.f32 %v480, %v723
  %v778 = vadd.f32 %v482, %v725
  %v779 = vadd.f32 %v484, %v727
  %v780 = vadd.f32 %v486, %v729
  %v781 = vadd.f32 %v490, %v733
  %v782 = vadd.f32 %v492, %v735
  %v783 = vadd.f32 %v494, %v737
  %v784 = vadd.f32 %v496, %v739
  %v785 = vadd.f32 %v500, %v743
  %v786 = vadd.f32 %v502, %v745
  %v787 = vadd.f32 %v504, %v747
  %v788 = vadd.f32 %v506, %v749
  %v789 = vadd.f32 %v510, %v753
  %v790 = vadd.f32 %v512, %v755
  %v791 = vadd.f32 %v514, %v757
  %v792 = vadd.f32 %v516, %v759
  %v793 = vld [vmem:[%s2] sm:$0x3]
  %v795 = vlaneseq
  %v796 = vshrl.u32 %v795, 7
  %v797 = vsub.s32 0, %v796
  %v798 = vrot.slane %v793, %v797
  %v799 = vlaneseq
  %v800 = vshrl.u32 %v799, 7
  %v801 = vsub.s32 1, %v800
  %v802 = vrot.slane %v793, %v801
  %v805 = vadd.f32 %v761, %v798
  %v806 = vadd.f32 %v762, %v802
  %v807 = vadd.f32 %v763, %v798
  %v808 = vadd.f32 %v764, %v802
  %v809 = vadd.f32 %v765, %v798
  %v810 = vadd.f32 %v766, %v802
  %v811 = vadd.f32 %v767, %v798
  %v812 = vadd.f32 %v768, %v802
  %v813 = vadd.f32 %v769, %v798
  %v814 = vadd.f32 %v770, %v802
  %v815 = vadd.f32 %v771, %v798
  %v816 = vadd.f32 %v772, %v802
  %v817 = vadd.f32 %v773, %v798
  %v818 = vadd.f32 %v774, %v802
  %v819 = vadd.f32 %v775, %v798
  %v820 = vadd.f32 %v776, %v802
  %v821 = vadd.f32 %v777, %v798
  %v822 = vadd.f32 %v778, %v802
  %v823 = vadd.f32 %v779, %v798
  %v824 = vadd.f32 %v780, %v802
  %v825 = vadd.f32 %v781, %v798
  %v826 = vadd.f32 %v782, %v802
  %v827 = vadd.f32 %v783, %v798
  %v828 = vadd.f32 %v784, %v802
  %v829 = vadd.f32 %v785, %v798
  %v830 = vadd.f32 %v786, %v802
  %v831 = vadd.f32 %v787, %v798
  %v832 = vadd.f32 %v788, %v802
  %v833 = vadd.f32 %v789, %v798
  %v834 = vadd.f32 %v790, %v802
  %v835 = vadd.f32 %v791, %v798
  %v836 = vadd.f32 %v792, %v802
  %v837 = vmax.f32 %v805, 0.0
  %v838 = vmax.f32 %v806, 0.0
  %v839 = vmax.f32 %v807, 0.0
  %v840 = vmax.f32 %v808, 0.0
  %v841 = vmax.f32 %v809, 0.0
  %v842 = vmax.f32 %v810, 0.0
  %v843 = vmax.f32 %v811, 0.0
  %v844 = vmax.f32 %v812, 0.0
  %v845 = vmax.f32 %v813, 0.0
  %v846 = vmax.f32 %v814, 0.0
  %v847 = vmax.f32 %v815, 0.0
  %v848 = vmax.f32 %v816, 0.0
  %v849 = vmax.f32 %v817, 0.0
  %v850 = vmax.f32 %v818, 0.0
  %v851 = vmax.f32 %v819, 0.0
  %v852 = vmax.f32 %v820, 0.0
  %v853 = vmax.f32 %v821, 0.0
  %v854 = vmax.f32 %v822, 0.0
  %v855 = vmax.f32 %v823, 0.0
  %v856 = vmax.f32 %v824, 0.0
  %v857 = vmax.f32 %v825, 0.0
  %v858 = vmax.f32 %v826, 0.0
  %v859 = vmax.f32 %v827, 0.0
  %v860 = vmax.f32 %v828, 0.0
  %v861 = vmax.f32 %v829, 0.0
  %v862 = vmax.f32 %v830, 0.0
  %v863 = vmax.f32 %v831, 0.0
  %v864 = vmax.f32 %v832, 0.0
  %v865 = vmax.f32 %v833, 0.0
  %v866 = vmax.f32 %v834, 0.0
  %v867 = vmax.f32 %v835, 0.0
  %v868 = vmax.f32 %v836, 0.0
  %v869 = vld [vmem:[%s3] sm:$0xff]
  %v870 = vld [vmem:[%s3 + $0x8] sm:$0xff]
  %v871 = vld [vmem:[%s3 + $0x10] sm:$0xff]
  %v872 = vld [vmem:[%s3 + $0x18] sm:$0xff]
  %873 = vmatprep.subr.mxu0 %v868
  %874 = vmatpush1.msra.mxu0 %v867
  %875 = vmatprep.subr.mxu0 %v866
  %876 = vmatpush1.msra.mxu0 %v865
  %877 = vmatprep.subr.mxu0 %v864
  %878 = vmatpush1.msra.mxu0 %v863
  %879 = vmatprep.subr.mxu0 %v862
  %880 = vmatpush1.msra.mxu0 %v861
  %881 = vmatprep.subr.mxu0 %v860
  %882 = vmatpush1.msra.mxu0 %v859
  %883 = vmatprep.subr.mxu0 %v858
  %884 = vmatpush1.msra.mxu0 %v857
  %885 = vmatprep.subr.mxu0 %v856
  %886 = vmatpush1.msra.mxu0 %v855
  %887 = vmatprep.subr.mxu0 %v854
  %888 = vmatpush1.msra.mxu0 %v853
  %889 = vmatprep.subr.mxu0 %v852
  %890 = vmatpush1.msra.mxu0 %v851
  %891 = vmatprep.subr.mxu0 %v850
  %892 = vmatpush1.msra.mxu0 %v849
  %893 = vmatprep.subr.mxu0 %v848
  %894 = vmatpush1.msra.mxu0 %v847
  %895 = vmatprep.subr.mxu0 %v846
  %896 = vmatpush1.msra.mxu0 %v845
  %897 = vmatprep.subr.mxu0 %v844
  %898 = vmatpush1.msra.mxu0 %v843
  %899 = vmatprep.subr.mxu0 %v842
  %900 = vmatpush1.msra.mxu0 %v841
  %901 = vmatprep.subr.mxu0 %v840
  %902 = vmatpush1.msra.mxu0 %v839
  %903 = vmatprep.subr.mxu0 %v838
  %904 = vmatpush1.msra.mxu0 %v837
  %905 = vmatprep.subr.mxu0 0.0
  %906 = vmatpush2.msra.mxu0 0.0
  %907 = vmatprep.subr.mxu0 0.0
  %908 = vmatpush2.msra.mxu0 0.0
  %909 = vmatprep.subr.mxu0 0.0
  %910 = vmatpush2.msra.mxu0 0.0
  %911 = vmatprep.subr.mxu0 0.0
  %912 = vmatpush2.msra.mxu0 0.0
  %913 = vmatprep.subr.mxu0 0.0
  %914 = vmatpush2.msra.mxu0 0.0
  %915 = vmatprep.subr.mxu0 0.0
  %916 = vmatpush2.msra.mxu0 0.0
  %917 = vmatprep.subr.mxu0 0.0
  %918 = vmatpush2.msra.mxu0 0.0
  %919 = vmatprep.subr.mxu0 0.0
  %920 = vmatpush2.msra.mxu0 0.0
  %921 = vmatprep.subr.mxu0 0.0
  %922 = vmatpush2.msra.mxu0 0.0
  %923 = vmatprep.subr.mxu0 0.0
  %924 = vmatpush2.msra.mxu0 0.0
  %925 = vmatprep.subr.mxu0 0.0
  %926 = vmatpush2.msra.mxu0 0.0
  %927 = vmatprep.subr.mxu0 0.0
  %928 = vmatpush2.msra.mxu0 0.0
  %929 = vmatprep.subr.mxu0 0.0
  %930 = vmatpush2.msra.mxu0 0.0
  %931 = vmatprep.subr.mxu0 0.0
  %932 = vmatpush2.msra.mxu0 0.0
  %933 = vmatprep.subr.mxu0 0.0
  %934 = vmatpush2.msra.mxu0 0.0
  %935 = vmatprep.subr.mxu0 0.0
  %936 = vmatpush2.msra.mxu0 0.0
  %937 = vmatprep.mubr.f32.mxu0 0.0
  %938 = vmatmul.mubr.f32.gmra.mxu0 %v869
  %v939 = vpop.f32.mrf.mxu0
  %v940 = vadd.f32 0.0, %v939
  %v941 = vpop.f32.mrf.mxu0
  %v942 = vadd.f32 0.0, %v941
  %943 = vmatprep.mubr.f32.mxu0 0.0
  %944 = vmatmul.mubr.f32.gmra.mxu0 %v870
  %v945 = vpop.f32.mrf.mxu0
  %v946 = vadd.f32 0.0, %v945
  %v947 = vpop.f32.mrf.mxu0
  %v948 = vadd.f32 0.0, %v947
  %949 = vmatprep.mubr.f32.mxu0 0.0
  %950 = vmatmul.mubr.f32.gmra.mxu0 %v871
  %v951 = vpop.f32.mrf.mxu0
  %v952 = vadd.f32 0.0, %v951
  %v953 = vpop.f32.mrf.mxu0
  %v954 = vadd.f32 0.0, %v953
  %955 = vmatprep.mubr.f32.mxu0 0.0
  %956 = vmatmul.mubr.f32.gmra.mxu0 %v872
  %v957 = vpop.f32.mrf.mxu0
  %v958 = vadd.f32 0.0, %v957
  %v959 = vpop.f32.mrf.mxu0
  %v960 = vadd.f32 0.0, %v959
  %961 = vdwg.mxu0
  %v962 = vld [vmem:[%s5] sm:$0x1]
  %v963 = vld [vmem:[%s4] sm:$0xff]
  %v964 = vld [vmem:[%s4 + $0x8] sm:$0xff]
  %v965 = vld [vmem:[%s4 + $0x10] sm:$0xff]
  %v966 = vld [vmem:[%s4 + $0x18] sm:$0xff]
  %v967 = vld [vmem:[%s4 + $0x20] sm:$0xff]
  %v968 = vld [vmem:[%s4 + $0x28] sm:$0xff]
  %v969 = vld [vmem:[%s4 + $0x30] sm:$0xff]
  %v970 = vld [vmem:[%s4 + $0x38] sm:$0xff]
  %v971 = vld [vmem:[%s4 + $0x40] sm:$0xff]
  %v972 = vld [vmem:[%s4 + $0x48] sm:$0xff]
  %v973 = vld [vmem:[%s4 + $0x50] sm:$0xff]
  %v974 = vld [vmem:[%s4 + $0x58] sm:$0xff]
  %v975 = vld [vmem:[%s4 + $0x60] sm:$0xff]
  %v976 = vld [vmem:[%s4 + $0x68] sm:$0xff]
  %v977 = vld [vmem:[%s4 + $0x70] sm:$0xff]
  %v978 = vld [vmem:[%s4 + $0x78] sm:$0xff]
  %v979 = vld [vmem:[%s4 + $0x80] sm:$0xff]
  %v980 = vld [vmem:[%s4 + $0x88] sm:$0xff]
  %v981 = vld [vmem:[%s4 + $0x90] sm:$0xff]
  %v982 = vld [vmem:[%s4 + $0x98] sm:$0xff]
  %v983 = vld [vmem:[%s4 + $0xa0] sm:$0xff]
  %v984 = vld [vmem:[%s4 + $0xa8] sm:$0xff]
  %v985 = vld [vmem:[%s4 + $0xb0] sm:$0xff]
  %v986 = vld [vmem:[%s4 + $0xb8] sm:$0xff]
  %v987 = vld [vmem:[%s4 + $0xc0] sm:$0xff]
  %v988 = vld [vmem:[%s4 + $0xc8] sm:$0xff]
  %v989 = vld [vmem:[%s4 + $0xd0] sm:$0xff]
  %v990 = vld [vmem:[%s4 + $0xd8] sm:$0xff]
  %v991 = vld [vmem:[%s4 + $0xe0] sm:$0xff]
  %v992 = vld [vmem:[%s4 + $0xe8] sm:$0xff]
  %v993 = vld [vmem:[%s4 + $0xf0] sm:$0xff]
  %v994 = vld [vmem:[%s4 + $0xf8] sm:$0xff]
  %995 = vmatprep.subr.mxu0 0.0
  %996 = vmatpush1.msra.mxu0 %v978
  %997 = vmatprep.subr.mxu0 0.0
  %998 = vmatpush1.msra.mxu0 %v977
  %999 = vmatprep.subr.mxu0 0.0
  %1000 = vmatpush1.msra.mxu0 %v976
  %1001 = vmatprep.subr.mxu0 0.0
  %1002 = vmatpush1.msra.mxu0 %v975
  %1003 = vmatprep.subr.mxu0 0.0
  %1004 = vmatpush1.msra.mxu0 %v974
  %1005 = vmatprep.subr.mxu0 0.0
  %1006 = vmatpush1.msra.mxu0 %v973
  %1007 = vmatprep.subr.mxu0 0.0
  %1008 = vmatpush1.msra.mxu0 %v972
  %1009 = vmatprep.subr.mxu0 0.0
  %1010 = vmatpush1.msra.mxu0 %v971
  %1011 = vmatprep.subr.mxu0 0.0
  %1012 = vmatpush1.msra.mxu0 %v970
  %1013 = vmatprep.subr.mxu0 0.0
  %1014 = vmatpush1.msra.mxu0 %v969
  %1015 = vmatprep.subr.mxu0 0.0
  %1016 = vmatpush1.msra.mxu0 %v968
  %1017 = vmatprep.subr.mxu0 0.0
  %1018 = vmatpush1.msra.mxu0 %v967
  %1019 = vmatprep.subr.mxu0 0.0
  %1020 = vmatpush1.msra.mxu0 %v966
  %1021 = vmatprep.subr.mxu0 0.0
  %1022 = vmatpush1.msra.mxu0 %v965
  %1023 = vmatprep.subr.mxu0 0.0
  %1024 = vmatpush1.msra.mxu0 %v964
  %1025 = vmatprep.subr.mxu0 0.0
  %1026 = vmatpush1.msra.mxu0 %v963
  %1027 = vmatprep.subr.mxu0 0.0
  %1028 = vmatpush2.msra.mxu0 %v994
  %1029 = vmatprep.subr.mxu0 0.0
  %1030 = vmatpush2.msra.mxu0 %v993
  %1031 = vmatprep.subr.mxu0 0.0
  %1032 = vmatpush2.msra.mxu0 %v992
  %1033 = vmatprep.subr.mxu0 0.0
  %1034 = vmatpush2.msra.mxu0 %v991
  %1035 = vmatprep.subr.mxu0 0.0
  %1036 = vmatpush2.msra.mxu0 %v990
  %1037 = vmatprep.subr.mxu0 0.0
  %1038 = vmatpush2.msra.mxu0 %v989
  %1039 = vmatprep.subr.mxu0 0.0
  %1040 = vmatpush2.msra.mxu0 %v988
  %1041 = vmatprep.subr.mxu0 0.0
  %1042 = vmatpush2.msra.mxu0 %v987
  %1043 = vmatprep.subr.mxu0 0.0
  %1044 = vmatpush2.msra.mxu0 %v986
  %1045 = vmatprep.subr.mxu0 0.0
  %1046 = vmatpush2.msra.mxu0 %v985
  %1047 = vmatprep.subr.mxu0 0.0
  %1048 = vmatpush2.msra.mxu0 %v984
  %1049 = vmatprep.subr.mxu0 0.0
  %1050 = vmatpush2.msra.mxu0 %v983
  %1051 = vmatprep.subr.mxu0 0.0
  %1052 = vmatpush2.msra.mxu0 %v982
  %1053 = vmatprep.subr.mxu0 0.0
  %1054 = vmatpush2.msra.mxu0 %v981
  %1055 = vmatprep.subr.mxu0 0.0
  %1056 = vmatpush2.msra.mxu0 %v980
  %1057 = vmatprep.subr.mxu0 0.0
  %1058 = vmatpush2.msra.mxu0 %v979
  %1059 = vmatprep.mubr.f32.mxu0 %v942
  %1060 = vmatmul.mubr.f32.gmra.mxu0 %v940
  %v1061 = vpop.f32.mrf.mxu0
  %v1062 = vadd.f32 0.0, %v1061
  %v1063 = vpop.f32.mrf.mxu0
  %1064 = vdwg.mxu0
  %v1066 = vlaneseq
  %v1067 = vshrl.u32 %v1066, 7
  %v1068 = vsub.s32 0, %v1067
  %v1069 = vrot.slane %v962, %v1068
  %v1071 = vadd.f32 %v1069, %v1062
  %s1072 = scalar_lea.vmem %s4, 256
  %v1073 = vld [vmem:[%s1072] sm:$0xff]
  %v1074 = vld [vmem:[%s1072 + $0x8] sm:$0xff]
  %v1075 = vld [vmem:[%s1072 + $0x10] sm:$0xff]
  %v1076 = vld [vmem:[%s1072 + $0x18] sm:$0xff]
  %v1077 = vld [vmem:[%s1072 + $0x20] sm:$0xff]
  %v1078 = vld [vmem:[%s1072 + $0x28] sm:$0xff]
  %v1079 = vld [vmem:[%s1072 + $0x30] sm:$0xff]
  %v1080 = vld [vmem:[%s1072 + $0x38] sm:$0xff]
  %v1081 = vld [vmem:[%s1072 + $0x40] sm:$0xff]
  %v1082 = vld [vmem:[%s1072 + $0x48] sm:$0xff]
  %v1083 = vld [vmem:[%s1072 + $0x50] sm:$0xff]
  %v1084 = vld [vmem:[%s1072 + $0x58] sm:$0xff]
  %v1085 = vld [vmem:[%s1072 + $0x60] sm:$0xff]
  %v1086 = vld [vmem:[%s1072 + $0x68] sm:$0xff]
  %v1087 = vld [vmem:[%s1072 + $0x70] sm:$0xff]
  %v1088 = vld [vmem:[%s1072 + $0x78] sm:$0xff]
  %v1089 = vld [vmem:[%s1072 + $0x80] sm:$0xff]
  %v1090 = vld [vmem:[%s1072 + $0x88] sm:$0xff]
  %v1091 = vld [vmem:[%s1072 + $0x90] sm:$0xff]
  %v1092 = vld [vmem:[%s1072 + $0x98] sm:$0xff]
  %v1093 = vld [vmem:[%s1072 + $0xa0] sm:$0xff]
  %v1094 = vld [vmem:[%s1072 + $0xa8] sm:$0xff]
  %v1095 = vld [vmem:[%s1072 + $0xb0] sm:$0xff]
  %v1096 = vld [vmem:[%s1072 + $0xb8] sm:$0xff]
  %v1097 = vld [vmem:[%s1072 + $0xc0] sm:$0xff]
  %v1098 = vld [vmem:[%s1072 + $0xc8] sm:$0xff]
  %v1099 = vld [vmem:[%s1072 + $0xd0] sm:$0xff]
  %v1100 = vld [vmem:[%s1072 + $0xd8] sm:$0xff]
  %v1101 = vld [vmem:[%s1072 + $0xe0] sm:$0xff]
  %v1102 = vld [vmem:[%s1072 + $0xe8] sm:$0xff]
  %v1103 = vld [vmem:[%s1072 + $0xf0] sm:$0xff]
  %v1104 = vld [vmem:[%s1072 + $0xf8] sm:$0xff]
  %1105 = vmatprep.subr.mxu0 0.0
  %1106 = vmatpush1.msra.mxu0 %v1088
  %1107 = vmatprep.subr.mxu0 0.0
  %1108 = vmatpush1.msra.mxu0 %v1087
  %1109 = vmatprep.subr.mxu0 0.0
  %1110 = vmatpush1.msra.mxu0 %v1086
  %1111 = vmatprep.subr.mxu0 0.0
  %1112 = vmatpush1.msra.mxu0 %v1085
  %1113 = vmatprep.subr.mxu0 0.0
  %1114 = vmatpush1.msra.mxu0 %v1084
  %1115 = vmatprep.subr.mxu0 0.0
  %1116 = vmatpush1.msra.mxu0 %v1083
  %1117 = vmatprep.subr.mxu0 0.0
  %1118 = vmatpush1.msra.mxu0 %v1082
  %1119 = vmatprep.subr.mxu0 0.0
  %1120 = vmatpush1.msra.mxu0 %v1081
  %1121 = vmatprep.subr.mxu0 0.0
  %1122 = vmatpush1.msra.mxu0 %v1080
  %1123 = vmatprep.subr.mxu0 0.0
  %1124 = vmatpush1.msra.mxu0 %v1079
  %1125 = vmatprep.subr.mxu0 0.0
  %1126 = vmatpush1.msra.mxu0 %v1078
  %1127 = vmatprep.subr.mxu0 0.0
  %1128 = vmatpush1.msra.mxu0 %v1077
  %1129 = vmatprep.subr.mxu0 0.0
  %1130 = vmatpush1.msra.mxu0 %v1076
  %1131 = vmatprep.subr.mxu0 0.0
  %1132 = vmatpush1.msra.mxu0 %v1075
  %1133 = vmatprep.subr.mxu0 0.0
  %1134 = vmatpush1.msra.mxu0 %v1074
  %1135 = vmatprep.subr.mxu0 0.0
  %1136 = vmatpush1.msra.mxu0 %v1073
  %1137 = vmatprep.subr.mxu0 0.0
  %1138 = vmatpush2.msra.mxu0 %v1104
  %1139 = vmatprep.subr.mxu0 0.0
  %1140 = vmatpush2.msra.mxu0 %v1103
  %1141 = vmatprep.subr.mxu0 0.0
  %1142 = vmatpush2.msra.mxu0 %v1102
  %1143 = vmatprep.subr.mxu0 0.0
  %1144 = vmatpush2.msra.mxu0 %v1101
  %1145 = vmatprep.subr.mxu0 0.0
  %1146 = vmatpush2.msra.mxu0 %v1100
  %1147 = vmatprep.subr.mxu0 0.0
  %1148 = vmatpush2.msra.mxu0 %v1099
  %1149 = vmatprep.subr.mxu0 0.0
  %1150 = vmatpush2.msra.mxu0 %v1098
  %1151 = vmatprep.subr.mxu0 0.0
  %1152 = vmatpush2.msra.mxu0 %v1097
  %1153 = vmatprep.subr.mxu0 0.0
  %1154 = vmatpush2.msra.mxu0 %v1096
  %1155 = vmatprep.subr.mxu0 0.0
  %1156 = vmatpush2.msra.mxu0 %v1095
  %1157 = vmatprep.subr.mxu0 0.0
  %1158 = vmatpush2.msra.mxu0 %v1094
  %1159 = vmatprep.subr.mxu0 0.0
  %1160 = vmatpush2.msra.mxu0 %v1093
  %1161 = vmatprep.subr.mxu0 0.0
  %1162 = vmatpush2.msra.mxu0 %v1092
  %1163 = vmatprep.subr.mxu0 0.0
  %1164 = vmatpush2.msra.mxu0 %v1091
  %1165 = vmatprep.subr.mxu0 0.0
  %1166 = vmatpush2.msra.mxu0 %v1090
  %1167 = vmatprep.subr.mxu0 0.0
  %1168 = vmatpush2.msra.mxu0 %v1089
  %1169 = vmatprep.mubr.f32.mxu0 %v948
  %1170 = vmatmul.mubr.f32.gmra.mxu0 %v946
  %v1171 = vpop.f32.mrf.mxu0
  %v1172 = vadd.f32 0.0, %v1171
  %v1173 = vpop.f32.mrf.mxu0
  %1174 = vdwg.mxu0
  %v1175 = vadd.f32 %v1071, %v1172
  %s1176 = scalar_lea.vmem %s4, 512
  %v1177 = vld [vmem:[%s1176] sm:$0xff]
  %v1178 = vld [vmem:[%s1176 + $0x8] sm:$0xff]
  %v1179 = vld [vmem:[%s1176 + $0x10] sm:$0xff]
  %v1180 = vld [vmem:[%s1176 + $0x18] sm:$0xff]
  %v1181 = vld [vmem:[%s1176 + $0x20] sm:$0xff]
  %v1182 = vld [vmem:[%s1176 + $0x28] sm:$0xff]
  %v1183 = vld [vmem:[%s1176 + $0x30] sm:$0xff]
  %v1184 = vld [vmem:[%s1176 + $0x38] sm:$0xff]
  %v1185 = vld [vmem:[%s1176 + $0x40] sm:$0xff]
  %v1186 = vld [vmem:[%s1176 + $0x48] sm:$0xff]
  %v1187 = vld [vmem:[%s1176 + $0x50] sm:$0xff]
  %v1188 = vld [vmem:[%s1176 + $0x58] sm:$0xff]
  %v1189 = vld [vmem:[%s1176 + $0x60] sm:$0xff]
  %v1190 = vld [vmem:[%s1176 + $0x68] sm:$0xff]
  %v1191 = vld [vmem:[%s1176 + $0x70] sm:$0xff]
  %v1192 = vld [vmem:[%s1176 + $0x78] sm:$0xff]
  %v1193 = vld [vmem:[%s1176 + $0x80] sm:$0xff]
  %v1194 = vld [vmem:[%s1176 + $0x88] sm:$0xff]
  %v1195 = vld [vmem:[%s1176 + $0x90] sm:$0xff]
  %v1196 = vld [vmem:[%s1176 + $0x98] sm:$0xff]
  %v1197 = vld [vmem:[%s1176 + $0xa0] sm:$0xff]
  %v1198 = vld [vmem:[%s1176 + $0xa8] sm:$0xff]
  %v1199 = vld [vmem:[%s1176 + $0xb0] sm:$0xff]
  %v1200 = vld [vmem:[%s1176 + $0xb8] sm:$0xff]
  %v1201 = vld [vmem:[%s1176 + $0xc0] sm:$0xff]
  %v1202 = vld [vmem:[%s1176 + $0xc8] sm:$0xff]
  %v1203 = vld [vmem:[%s1176 + $0xd0] sm:$0xff]
  %v1204 = vld [vmem:[%s1176 + $0xd8] sm:$0xff]
  %v1205 = vld [vmem:[%s1176 + $0xe0] sm:$0xff]
  %v1206 = vld [vmem:[%s1176 + $0xe8] sm:$0xff]
  %v1207 = vld [vmem:[%s1176 + $0xf0] sm:$0xff]
  %v1208 = vld [vmem:[%s1176 + $0xf8] sm:$0xff]
  %1209 = vmatprep.subr.mxu0 0.0
  %1210 = vmatpush1.msra.mxu0 %v1192
  %1211 = vmatprep.subr.mxu0 0.0
  %1212 = vmatpush1.msra.mxu0 %v1191
  %1213 = vmatprep.subr.mxu0 0.0
  %1214 = vmatpush1.msra.mxu0 %v1190
  %1215 = vmatprep.subr.mxu0 0.0
  %1216 = vmatpush1.msra.mxu0 %v1189
  %1217 = vmatprep.subr.mxu0 0.0
  %1218 = vmatpush1.msra.mxu0 %v1188
  %1219 = vmatprep.subr.mxu0 0.0
  %1220 = vmatpush1.msra.mxu0 %v1187
  %1221 = vmatprep.subr.mxu0 0.0
  %1222 = vmatpush1.msra.mxu0 %v1186
  %1223 = vmatprep.subr.mxu0 0.0
  %1224 = vmatpush1.msra.mxu0 %v1185
  %1225 = vmatprep.subr.mxu0 0.0
  %1226 = vmatpush1.msra.mxu0 %v1184
  %1227 = vmatprep.subr.mxu0 0.0
  %1228 = vmatpush1.msra.mxu0 %v1183
  %1229 = vmatprep.subr.mxu0 0.0
  %1230 = vmatpush1.msra.mxu0 %v1182
  %1231 = vmatprep.subr.mxu0 0.0
  %1232 = vmatpush1.msra.mxu0 %v1181
  %1233 = vmatprep.subr.mxu0 0.0
  %1234 = vmatpush1.msra.mxu0 %v1180
  %1235 = vmatprep.subr.mxu0 0.0
  %1236 = vmatpush1.msra.mxu0 %v1179
  %1237 = vmatprep.subr.mxu0 0.0
  %1238 = vmatpush1.msra.mxu0 %v1178
  %1239 = vmatprep.subr.mxu0 0.0
  %1240 = vmatpush1.msra.mxu0 %v1177
  %1241 = vmatprep.subr.mxu0 0.0
  %1242 = vmatpush2.msra.mxu0 %v1208
  %1243 = vmatprep.subr.mxu0 0.0
  %1244 = vmatpush2.msra.mxu0 %v1207
  %1245 = vmatprep.subr.mxu0 0.0
  %1246 = vmatpush2.msra.mxu0 %v1206
  %1247 = vmatprep.subr.mxu0 0.0
  %1248 = vmatpush2.msra.mxu0 %v1205
  %1249 = vmatprep.subr.mxu0 0.0
  %1250 = vmatpush2.msra.mxu0 %v1204
  %1251 = vmatprep.subr.mxu0 0.0
  %1252 = vmatpush2.msra.mxu0 %v1203
  %1253 = vmatprep.subr.mxu0 0.0
  %1254 = vmatpush2.msra.mxu0 %v1202
  %1255 = vmatprep.subr.mxu0 0.0
  %1256 = vmatpush2.msra.mxu0 %v1201
  %1257 = vmatprep.subr.mxu0 0.0
  %1258 = vmatpush2.msra.mxu0 %v1200
  %1259 = vmatprep.subr.mxu0 0.0
  %1260 = vmatpush2.msra.mxu0 %v1199
  %1261 = vmatprep.subr.mxu0 0.0
  %1262 = vmatpush2.msra.mxu0 %v1198
  %1263 = vmatprep.subr.mxu0 0.0
  %1264 = vmatpush2.msra.mxu0 %v1197
  %1265 = vmatprep.subr.mxu0 0.0
  %1266 = vmatpush2.msra.mxu0 %v1196
  %1267 = vmatprep.subr.mxu0 0.0
  %1268 = vmatpush2.msra.mxu0 %v1195
  %1269 = vmatprep.subr.mxu0 0.0
  %1270 = vmatpush2.msra.mxu0 %v1194
  %1271 = vmatprep.subr.mxu0 0.0
  %1272 = vmatpush2.msra.mxu0 %v1193
  %1273 = vmatprep.mubr.f32.mxu0 %v954
  %1274 = vmatmul.mubr.f32.gmra.mxu0 %v952
  %v1275 = vpop.f32.mrf.mxu0
  %v1276 = vadd.f32 0.0, %v1275
  %v1277 = vpop.f32.mrf.mxu0
  %1278 = vdwg.mxu0
  %v1279 = vadd.f32 %v1175, %v1276
  %s1280 = scalar_lea.vmem %s4, 768
  %v1281 = vld [vmem:[%s1280] sm:$0xff]
  %v1282 = vld [vmem:[%s1280 + $0x8] sm:$0xff]
  %v1283 = vld [vmem:[%s1280 + $0x10] sm:$0xff]
  %v1284 = vld [vmem:[%s1280 + $0x18] sm:$0xff]
  %v1285 = vld [vmem:[%s1280 + $0x20] sm:$0xff]
  %v1286 = vld [vmem:[%s1280 + $0x28] sm:$0xff]
  %v1287 = vld [vmem:[%s1280 + $0x30] sm:$0xff]
  %v1288 = vld [vmem:[%s1280 + $0x38] sm:$0xff]
  %v1289 = vld [vmem:[%s1280 + $0x40] sm:$0xff]
  %v1290 = vld [vmem:[%s1280 + $0x48] sm:$0xff]
  %v1291 = vld [vmem:[%s1280 + $0x50] sm:$0xff]
  %v1292 = vld [vmem:[%s1280 + $0x58] sm:$0xff]
  %v1293 = vld [vmem:[%s1280 + $0x60] sm:$0xff]
  %v1294 = vld [vmem:[%s1280 + $0x68] sm:$0xff]
  %v1295 = vld [vmem:[%s1280 + $0x70] sm:$0xff]
  %v1296 = vld [vmem:[%s1280 + $0x78] sm:$0xff]
  %v1297 = vld [vmem:[%s1280 + $0x80] sm:$0xff]
  %v1298 = vld [vmem:[%s1280 + $0x88] sm:$0xff]
  %v1299 = vld [vmem:[%s1280 + $0x90] sm:$0xff]
  %v1300 = vld [vmem:[%s1280 + $0x98] sm:$0xff]
  %v1301 = vld [vmem:[%s1280 + $0xa0] sm:$0xff]
  %v1302 = vld [vmem:[%s1280 + $0xa8] sm:$0xff]
  %v1303 = vld [vmem:[%s1280 + $0xb0] sm:$0xff]
  %v1304 = vld [vmem:[%s1280 + $0xb8] sm:$0xff]
  %v1305 = vld [vmem:[%s1280 + $0xc0] sm:$0xff]
  %v1306 = vld [vmem:[%s1280 + $0xc8] sm:$0xff]
  %v1307 = vld [vmem:[%s1280 + $0xd0] sm:$0xff]
  %v1308 = vld [vmem:[%s1280 + $0xd8] sm:$0xff]
  %v1309 = vld [vmem:[%s1280 + $0xe0] sm:$0xff]
  %v1310 = vld [vmem:[%s1280 + $0xe8] sm:$0xff]
  %v1311 = vld [vmem:[%s1280 + $0xf0] sm:$0xff]
  %v1312 = vld [vmem:[%s1280 + $0xf8] sm:$0xff]
  %1313 = vmatprep.subr.mxu0 0.0
  %1314 = vmatpush1.msra.mxu0 %v1296
  %1315 = vmatprep.subr.mxu0 0.0
  %1316 = vmatpush1.msra.mxu0 %v1295
  %1317 = vmatprep.subr.mxu0 0.0
  %1318 = vmatpush1.msra.mxu0 %v1294
  %1319 = vmatprep.subr.mxu0 0.0
  %1320 = vmatpush1.msra.mxu0 %v1293
  %1321 = vmatprep.subr.mxu0 0.0
  %1322 = vmatpush1.msra.mxu0 %v1292
  %1323 = vmatprep.subr.mxu0 0.0
  %1324 = vmatpush1.msra.mxu0 %v1291
  %1325 = vmatprep.subr.mxu0 0.0
  %1326 = vmatpush1.msra.mxu0 %v1290
  %1327 = vmatprep.subr.mxu0 0.0
  %1328 = vmatpush1.msra.mxu0 %v1289
  %1329 = vmatprep.subr.mxu0 0.0
  %1330 = vmatpush1.msra.mxu0 %v1288
  %1331 = vmatprep.subr.mxu0 0.0
  %1332 = vmatpush1.msra.mxu0 %v1287
  %1333 = vmatprep.subr.mxu0 0.0
  %1334 = vmatpush1.msra.mxu0 %v1286
  %1335 = vmatprep.subr.mxu0 0.0
  %1336 = vmatpush1.msra.mxu0 %v1285
  %1337 = vmatprep.subr.mxu0 0.0
  %1338 = vmatpush1.msra.mxu0 %v1284
  %1339 = vmatprep.subr.mxu0 0.0
  %1340 = vmatpush1.msra.mxu0 %v1283
  %1341 = vmatprep.subr.mxu0 0.0
  %1342 = vmatpush1.msra.mxu0 %v1282
  %1343 = vmatprep.subr.mxu0 0.0
  %1344 = vmatpush1.msra.mxu0 %v1281
  %1345 = vmatprep.subr.mxu0 0.0
  %1346 = vmatpush2.msra.mxu0 %v1312
  %1347 = vmatprep.subr.mxu0 0.0
  %1348 = vmatpush2.msra.mxu0 %v1311
  %1349 = vmatprep.subr.mxu0 0.0
  %1350 = vmatpush2.msra.mxu0 %v1310
  %1351 = vmatprep.subr.mxu0 0.0
  %1352 = vmatpush2.msra.mxu0 %v1309
  %1353 = vmatprep.subr.mxu0 0.0
  %1354 = vmatpush2.msra.mxu0 %v1308
  %1355 = vmatprep.subr.mxu0 0.0
  %1356 = vmatpush2.msra.mxu0 %v1307
  %1357 = vmatprep.subr.mxu0 0.0
  %1358 = vmatpush2.msra.mxu0 %v1306
  %1359 = vmatprep.subr.mxu0 0.0
  %1360 = vmatpush2.msra.mxu0 %v1305
  %1361 = vmatprep.subr.mxu0 0.0
  %1362 = vmatpush2.msra.mxu0 %v1304
  %1363 = vmatprep.subr.mxu0 0.0
  %1364 = vmatpush2.msra.mxu0 %v1303
  %1365 = vmatprep.subr.mxu0 0.0
  %1366 = vmatpush2.msra.mxu0 %v1302
  %1367 = vmatprep.subr.mxu0 0.0
  %1368 = vmatpush2.msra.mxu0 %v1301
  %1369 = vmatprep.subr.mxu0 0.0
  %1370 = vmatpush2.msra.mxu0 %v1300
  %1371 = vmatprep.subr.mxu0 0.0
  %1372 = vmatpush2.msra.mxu0 %v1299
  %1373 = vmatprep.subr.mxu0 0.0
  %1374 = vmatpush2.msra.mxu0 %v1298
  %1375 = vmatprep.subr.mxu0 0.0
  %1376 = vmatpush2.msra.mxu0 %v1297
  %1377 = vmatprep.mubr.f32.mxu0 %v960
  %1378 = vmatmul.mubr.f32.gmra.mxu0 %v958
  %v1379 = vpop.f32.mrf.mxu0
  %v1380 = vadd.f32 0.0, %v1379
  %v1381 = vpop.f32.mrf.mxu0
  %1382 = vdwg.mxu0
  %v1383 = vadd.f32 %v1279, %v1380
  %v1384 = vmax.f32 %v1383, 0.0
  %v1385 = vld [vmem:[%s6] sm:$0x1]
  %v1387 = vlaneseq
  %v1388 = vshrl.u32 %v1387, 7
  %v1389 = vsub.s32 0, %v1388
  %v1390 = vrot.slane %v1385, %v1389
  %v1392 = vmul.f32 %v1384, %v1390
  %vm1393 = vcmask 261120
  %v1394 = vsel %vm1393, %v1392, 0.0
  %1395 = vadd.xlane.f32.xlu0 %v1394
  %v1396 = vpop.xlane.xlu0 %1395
  %v1397 = vld [vmem:[#allocation2] sm:$0x1]
  %v1399 = vlaneseq
  %v1400 = vshrl.u32 %v1399, 7
  %v1401 = vsub.s32 0, %v1400
  %v1402 = vrot.slane %v1397, %v1401
  %v1404 = vadd.f32 %v1396, %v1402
  %v1405 = vxor.u32 %v1404, 2147483648
  %v1406 = vmul.f32 %v1405, 1.442695
  %v1407 = vpow.pop %v1406
  %v1408 = vadd.f32 %v1407, 1.0
  %v1409 = vrcp.pop %v1408
  %v1410 = vmul.f32 1.0, %v1409
  %v1411 = vlaneseq
  %v1412 = vshrl.u32 %v1411, 7
  %v1413 = vlaneseq
  %v1414 = vand.u32 %v1413, 127
  %vm1415 = vcmp.eq.s32.totalorder %v1412, %v1414
  %1417 = vset.pattern.permute.xlu0 0
  %1418 = vperm.xlu0 %1417, %v1410
  %v1419 = vpop.permute.xlu0 %1418
  %v1421 = vsel %vm1415, %v1419, 0.0
  %v1422 = vrot.slane %v1421, 4
  %v1423 = vadd.f32 %v1421, %v1422
  %v1424 = vrot.slane %v1423, 2
  %v1425 = vadd.f32 %v1423, %v1424
  %v1426 = vrot.slane %v1425, 1
  %v1427 = vadd.f32 %v1425, %v1426
  %1428 = vst [vmem:[%s8] sm:$0x1] %v1427
  // Predicated region
  $region34: #{idrnd_liveness_v1_forward.1} parent=0 // pred_check
    _
  $region35: #{idrnd_liveness_v1_forward.1} parent=0 // pred_check_branch
    %1430 = sbr.rel (0) target = $region37
  $region36: #{idrnd_liveness_v1_forward.1} parent=0 // pred_region
    _
  $region37: #{idrnd_liveness_v1_forward.1} parent=0 // pred_fallthru
    _
  // Predicated region
  $region38: #{idrnd_liveness_v1_forward.1} parent=0 // pred_check
    _
  $region39: #{idrnd_liveness_v1_forward.1} parent=0 // pred_check_branch
    %1432 = sbr.rel (0) target = $region41
  $region40: #{idrnd_liveness_v1_forward.1} parent=0 // pred_region
    _
  $region41: #{idrnd_liveness_v1_forward.1} parent=0 // pred_fallthru
    _

</llo_original>
